<compile_context>
chip_gen: v7x
topology: tpu7x:2x2x1
jax: 0.10.0
libtpu: 0.0.40
codegen_flags: <defaults>
</compile_context>

<pallas_src>
import functools

import jax
import jax.numpy as jnp
from jax import lax
from jax.experimental import pallas as pl
from jax.experimental.pallas import tpu as pltpu


def _round_up(x, m):
    return (x + m - 1) // m * m


def _block_kernel(x_hbm, wdw_ref, b1_ref, wpw_ref, b2_ref, o_ref,
                  xwin, sem,
                  *, TH, TH_in, Wo, Cp, Cop, stride, R, mxu_dtype):
    # x_hbm : (N, Hp, Wp, Cp)    padded NHWC input, left in HBM (manual halo DMA)
    # wdw_ref: (9, Cp)           depthwise 3x3 weights, tap-major, BN1 scale folded in
    # b1_ref : (1, Cp)           folded BN1 bias
    # wpw_ref: (Cp, Cop)         pointwise 1x1 weights, BN2 scale folded in
    # b2_ref : (1, Cop)          folded BN2 bias
    # o_ref  : (1, TH, Wo, Cop)  output row tile (lane-dense: Cop % 128 == 0)
    # xwin   : (2, TH_in, Wp, Cp) VMEM double buffer for the input halo window
    # sem    : (2,) DMA semaphores
    n = pl.program_id(0)
    r = pl.program_id(1)
    slot = r % 2

    def _copy(row_tile, slot_):
        row0 = row_tile * (TH * stride)          # element offset into padded H
        return pltpu.make_async_copy(
            x_hbm.at[n, pl.ds(row0, TH_in)], xwin.at[slot_], sem.at[slot_])

    # Prime the pipeline on the first row tile of each image.
    @pl.when(r == 0)
    def _():
        _copy(0, 0).start()

    # Wait for the current window (started above if r == 0, else prefetched last step).
    _copy(r, slot).wait()

    # Prefetch the next row tile of the same image while this one is computed.
    @pl.when(r + 1 < R)
    def _():
        _copy(r + 1, 1 - slot).start()

    # ---- depthwise 3x3 conv: 9 shifted MACs on the VPU, taps read directly from the
    # ---- VMEM window ref via offset slices (no materialized window value).
    h_span = (TH - 1) * stride + 1
    w_span = (Wo - 1) * stride + 1
    acc = None
    for kh in range(3):
        for kw in range(3):
            patch = xwin[slot, kh:kh + h_span, kw:kw + w_span, :]
            if stride > 1:                       # untested/relayout path, see TODO above
                patch = patch[::stride, ::stride, :]
            tap = patch.astype(jnp.float32) * wdw_ref[kh * 3 + kw]
            acc = tap if acc is None else acc + tap          # (TH, Wo, Cp)

    # ---- BN1 (scale pre-folded into wdw) bias + ReLU ----
    h = jnp.maximum(acc + b1_ref[...], 0.0)                  # (TH, Wo, Cp)

    # ---- pointwise 1x1 conv as an MXU matmul over the channel (lane) axis ----
    # With TH and Wo multiples of 8 this collapse is layout-free.
    hm = h.reshape(TH * Wo, Cp)
    w_pw = wpw_ref[...]
    if mxu_dtype is not None:                    # optional bf16 operands for v6e/v7x MXU
        hm = hm.astype(mxu_dtype)
        w_pw = w_pw.astype(mxu_dtype)
    y = jnp.dot(hm, w_pw, preferred_element_type=jnp.float32)  # (TH*Wo, Cop)

    # ---- BN2 (scale pre-folded into wpw) bias + ReLU ----
    y = jnp.maximum(y + b2_ref[...], 0.0)
    o_ref[0] = y.reshape(TH, Wo, Cop).astype(o_ref.dtype)


def mobilenet_block(x_nchw, packed_params, *, stride=1, out_channels=None,
                    row_tile=8, mxu_dtype=None):
    """Forward pass of Block. x_nchw: (N, Cin, H, W). Returns (N, Cout, Ho, Wo)."""
    w_dw, b1, w_pw, b2 = packed_params
    N, Cin, H, W = x_nchw.shape
    Cp, Cop = w_pw.shape
    Cout = Cop if out_channels is None else out_channels
    Ho = (H + 2 - 3) // stride + 1
    Wo = (W + 2 - 3) // stride + 1

    # Row tile: largest divisor of Ho not exceeding row_tile (keeps shapes static).
    TH = min(row_tile, Ho)
    while Ho % TH:
        TH -= 1
    TH_in = (TH - 1) * stride + 3                # halo window rows per tile
    R = Ho // TH

    # NCHW -> NHWC, pad H/W by 1 (conv padding=1), pad channels up to a lane-dense Cp,
    # and pad the (already halo-padded) width to a multiple of 8 so the halo-window
    # sublane layout and DMA tiles are clean. Extra right columns are never read.
    x = jnp.transpose(x_nchw, (0, 2, 3, 1))
    Wp = _round_up(W + 2, 8)
    xp = jnp.pad(x, ((0, 0), (1, 1), (1, Wp - (W + 1)), (0, Cp - Cin)))

    kernel = functools.partial(
        _block_kernel, TH=TH, TH_in=TH_in, Wo=Wo, Cp=Cp, Cop=Cop,
        stride=stride, R=R, mxu_dtype=mxu_dtype)

    flops = 2 * N * Ho * Wo * (9 * Cin + Cin * Cout)
    bytes_accessed = (xp.size + N * Ho * Wo * Cop) * 4 \
        + (w_dw.size + b1.size + w_pw.size + b2.size) * 4

    out_nhwc = pl.pallas_call(
        kernel,
        out_shape=jax.ShapeDtypeStruct((N, Ho, Wo, Cop), x_nchw.dtype),
        grid_spec=pltpu.PrefetchScalarGridSpec(
            num_scalar_prefetch=0,
            grid=(N, R),
            in_specs=[
                pl.BlockSpec(memory_space=pl.ANY),              # input stays in HBM
                pl.BlockSpec((9, Cp), lambda n, r: (0, 0)),     # weights resident
                pl.BlockSpec((1, Cp), lambda n, r: (0, 0)),
                pl.BlockSpec((Cp, Cop), lambda n, r: (0, 0)),
                pl.BlockSpec((1, Cop), lambda n, r: (0, 0)),
            ],
            out_specs=pl.BlockSpec((1, TH, Wo, Cop), lambda n, r: (n, r, 0, 0)),
            scratch_shapes=[
                pltpu.VMEM((2, TH_in, Wp, Cp), xp.dtype),       # halo double buffer
                pltpu.SemaphoreType.DMA((2,)),
            ],
        ),
        compiler_params=pltpu.CompilerParams(
            dimension_semantics=("parallel", "arbitrary"),
            vmem_limit_bytes=32 * 1024 * 1024,
        ),
        cost_estimate=pl.CostEstimate(flops=flops, transcendentals=0,
                                      bytes_accessed=bytes_accessed),
    )(xp, w_dw, b1, w_pw, b2)

    out = out_nhwc[..., :Cout]                   # drop lane padding
    return jnp.transpose(out, (0, 3, 1, 2))      # back to NCHW


def init_params(key, in_planes, out_planes, eps=1e-5):
    """Deterministic synthetic PyTorch-style parameters (conv weights + eval-mode BN stats)."""
    ks = jax.random.split(key, 10)
    w_dw_pt = jax.random.normal(ks[0], (in_planes, 1, 3, 3), jnp.float32) * 0.1
    w_pw_pt = jax.random.normal(ks[1], (out_planes, in_planes, 1, 1), jnp.float32) * 0.1

    def bn(kg, kb, km, kv, c):
        gamma = jax.random.uniform(kg, (c,), jnp.float32, 0.5, 1.5)
        beta = jax.random.normal(kb, (c,), jnp.float32) * 0.1
        mean = jax.random.normal(km, (c,), jnp.float32) * 0.1
        var = jax.random.uniform(kv, (c,), jnp.float32, 0.5, 1.5)
        return gamma, beta, mean, var

    return {"w_dw": w_dw_pt, "w_pw": w_pw_pt,
            "bn1": bn(ks[2], ks[3], ks[4], ks[5], in_planes),
            "bn2": bn(ks[6], ks[7], ks[8], ks[9], out_planes),
            "eps": eps}


def pack_params(pt, lane=128):
    """Offline: fold eval-mode BN scales into conv weights and pad channels lane-dense.
    relu(bn(conv(x, w))) == relu(conv(x, w * scale) + bias). Padded channels get zero
    weights/bias so they contribute exact zeros and are sliced off after the kernel."""
    eps = pt["eps"]
    w_dw_pt, w_pw_pt = pt["w_dw"], pt["w_pw"]
    Cin, Cout = w_dw_pt.shape[0], w_pw_pt.shape[0]
    Cp, Cop = _round_up(Cin, lane), _round_up(Cout, lane)

    def fold(params):
        gamma, beta, mean, var = params
        scale = gamma / jnp.sqrt(var + eps)
        return scale, beta - mean * scale

    s1, b1 = fold(pt["bn1"])
    s2, b2 = fold(pt["bn2"])

    w_dw = jnp.transpose(w_dw_pt.reshape(Cin, 9), (1, 0)) * s1[None, :]      # (9, Cin)
    w_pw = jnp.transpose(w_pw_pt.reshape(Cout, Cin), (1, 0)) * s2[None, :]   # (Cin, Cout)

    w_dw = jnp.pad(w_dw, ((0, 0), (0, Cp - Cin)))
    b1p = jnp.pad(b1.reshape(1, Cin), ((0, 0), (0, Cp - Cin)))
    w_pw = jnp.pad(w_pw, ((0, Cp - Cin), (0, Cop - Cout)))
    b2p = jnp.pad(b2.reshape(1, Cout), ((0, 0), (0, Cop - Cout)))
    return (w_dw, b1p, w_pw, b2p), Cout


def reference_forward(x_nchw, pt, stride=1):
    """Pure-JAX reference (lax.conv + explicit eval-mode BN) mirroring the PyTorch forward."""
    eps = pt["eps"]
    w_dw_pt, w_pw_pt = pt["w_dw"], pt["w_pw"]
    Cin = x_nchw.shape[1]

    def bn(h, params):
        gamma, beta, mean, var = params
        inv = gamma / jnp.sqrt(var + eps)
        return (h - mean[None, :, None, None]) * inv[None, :, None, None] \
            + beta[None, :, None, None]

    dn = lax.conv_dimension_numbers(x_nchw.shape, w_dw_pt.shape, ("NCHW", "OIHW", "NCHW"))
    h = lax.conv_general_dilated(x_nchw, w_dw_pt, (stride, stride), ((1, 1), (1, 1)),
                                 dimension_numbers=dn, feature_group_count=Cin)
    h = jnp.maximum(bn(h, pt["bn1"]), 0.0)
    dn2 = lax.conv_dimension_numbers(h.shape, w_pw_pt.shape, ("NCHW", "OIHW", "NCHW"))
    y = lax.conv_general_dilated(h, w_pw_pt, (1, 1), ((0, 0), (0, 0)),
                                 dimension_numbers=dn2)
    return jnp.maximum(bn(y, pt["bn2"]), 0.0)


if __name__ == "__main__":
    key = jax.random.PRNGKey(0)
    k_x, k_p = jax.random.split(key)

    N, Cin, H, W = 2, 4, 16, 16
    Cout = 8
    stride = 1

    x = jax.random.normal(k_x, (N, Cin, H, W), jnp.float32)
    pt_params = init_params(k_p, Cin, Cout)
    packed, out_channels = pack_params(pt_params)

    out = mobilenet_block(x, packed, stride=stride, out_channels=out_channels)
    out = jax.block_until_ready(out)

    ref = reference_forward(x, pt_params, stride=stride)
    assert out.shape == ref.shape, (out.shape, ref.shape)
    err = float(jnp.max(jnp.abs(out - ref)))
    assert err < 1e-4, f"mismatch vs reference: {err}"

    print("KERNEL_OK")
</pallas_src>

<mosaic_0001>
module attributes {stable_mosaic.version = 11 : i64} {
  func.func @_block_kernel(%arg0: i32, %arg1: i32, %arg2: memref<2x18x24x128xf32, #tpu.memory_space<any>>, %arg3: memref<9x128xf32, #tpu.memory_space<vmem>>, %arg4: memref<1x128xf32, #tpu.memory_space<vmem>>, %arg5: memref<128x128xf32, #tpu.memory_space<vmem>>, %arg6: memref<1x128xf32, #tpu.memory_space<vmem>>, %arg7: memref<1x8x16x128xf32, #tpu.memory_space<vmem>>, %arg8: memref<2x10x24x128xf32, #tpu.memory_space<vmem>>, %arg9: memref<2x!tpu.dma_semaphore, #tpu.memory_space<semaphore_mem>>) attributes {dimension_semantics = [#tpu.dimension_semantics<parallel>, #tpu.dimension_semantics<arbitrary>], iteration_bounds = array<i64: 2, 2>, scalar_prefetch = 0 : i64, scratch_operands = 2 : i64, tpu.core_type = #tpu.core_type<tc>, window_params = [{}, {pipeline_mode = #tpu.pipeline_mode<synchronous>, transform_indices = @transform_1, window_bounds = array<i64: 9, 128>}, {pipeline_mode = #tpu.pipeline_mode<synchronous>, transform_indices = @transform_2, window_bounds = array<i64: 1, 128>}, {pipeline_mode = #tpu.pipeline_mode<synchronous>, transform_indices = @transform_3, window_bounds = array<i64: 128, 128>}, {pipeline_mode = #tpu.pipeline_mode<synchronous>, transform_indices = @transform_4, window_bounds = array<i64: 1, 128>}, {transform_indices = @transform_5, window_bounds = array<i64: 1, 8, 16, 128>}]} {
    %c2_i32 = arith.constant 2 : i32
    %c0_i32 = arith.constant 0 : i32
    %0 = arith.cmpi eq, %c2_i32, %c0_i32 : i32
    %c1_i32 = arith.constant 1 : i32
    %1 = arith.select %0, %c1_i32, %c2_i32 : i32
    %2 = arith.remsi %arg1, %1 : i32
    %c0_i32_0 = arith.constant 0 : i32
    %3 = arith.cmpi ne, %2, %c0_i32_0 : i32
    %c0_i32_1 = arith.constant 0 : i32
    %4 = arith.cmpi slt, %2, %c0_i32_1 : i32
    %c0_i32_2 = arith.constant 0 : i32
    %5 = arith.cmpi slt, %1, %c0_i32_2 : i32
    %6 = arith.xori %4, %5 : i1
    %7 = arith.andi %6, %3 : i1
    %8 = arith.addi %2, %1 : i32
    %9 = arith.select %7, %8, %2 : i32
    %c0_i32_3 = arith.constant 0 : i32
    %10 = arith.cmpi eq, %arg1, %c0_i32_3 : i32
    %11 = arith.extui %10 : i1 to i32
    %c0_i32_4 = arith.constant 0 : i32
    %12 = arith.cmpi ne, %11, %c0_i32_4 : i32
    scf.if %12 {
      %c0_i32_61 = arith.constant 0 : i32
      %c0_i32_62 = arith.constant 0 : i32
      %c0_i32_63 = arith.constant 0 : i32
      %c0_i32_64 = arith.constant 0 : i32
      %c0_i32_65 = arith.constant 0 : i32
      %122 = tpu.memref_slice %arg2[%arg0, %c0_i32_63, %c0_i32_64, %c0_i32_65] : memref<2x18x24x128xf32, #tpu.memory_space<any>> -> memref<1x10x24x128xf32, #tpu.memory_space<any>>
      %123 = tpu.memref_squeeze %122 : memref<1x10x24x128xf32, #tpu.memory_space<any>> -> memref<10x24x128xf32, #tpu.memory_space<any>>
      %c0_i32_66 = arith.constant 0 : i32
      %c0_i32_67 = arith.constant 0 : i32
      %c0_i32_68 = arith.constant 0 : i32
      %124 = tpu.memref_slice %arg8[%c0_i32_61, %c0_i32_66, %c0_i32_67, %c0_i32_68] : memref<2x10x24x128xf32, #tpu.memory_space<vmem>> -> memref<1x10x24x128xf32, #tpu.memory_space<vmem>>
      %125 = tpu.memref_squeeze %124 : memref<1x10x24x128xf32, #tpu.memory_space<vmem>> -> memref<10x24x128xf32, #tpu.memory_space<vmem>>
      %126 = tpu.memref_slice %arg9[%c0_i32_62] : memref<2x!tpu.dma_semaphore, #tpu.memory_space<semaphore_mem>> -> memref<1x!tpu.dma_semaphore, #tpu.memory_space<semaphore_mem>>
      %127 = tpu.memref_squeeze %126 : memref<1x!tpu.dma_semaphore, #tpu.memory_space<semaphore_mem>> -> memref<!tpu.dma_semaphore, #tpu.memory_space<semaphore_mem>>
      tpu.enqueue_dma source(%123 : memref<10x24x128xf32, #tpu.memory_space<any>>) target(%125 : memref<10x24x128xf32, #tpu.memory_space<vmem>>) target_semaphore(%127 : memref<!tpu.dma_semaphore, #tpu.memory_space<semaphore_mem>>)
    } else {
    }
    %c8_i32 = arith.constant 8 : i32
    %13 = arith.muli %arg1, %c8_i32 : i32
    %c0_i32_5 = arith.constant 0 : i32
    %c0_i32_6 = arith.constant 0 : i32
    %14 = tpu.memref_slice %arg2[%arg0, %13, %c0_i32_5, %c0_i32_6] : memref<2x18x24x128xf32, #tpu.memory_space<any>> -> memref<1x10x24x128xf32, #tpu.memory_space<any>>
    %15 = tpu.memref_squeeze %14 : memref<1x10x24x128xf32, #tpu.memory_space<any>> -> memref<10x24x128xf32, #tpu.memory_space<any>>
    %c0_i32_7 = arith.constant 0 : i32
    %c0_i32_8 = arith.constant 0 : i32
    %c0_i32_9 = arith.constant 0 : i32
    %16 = tpu.memref_slice %arg8[%9, %c0_i32_7, %c0_i32_8, %c0_i32_9] : memref<2x10x24x128xf32, #tpu.memory_space<vmem>> -> memref<1x10x24x128xf32, #tpu.memory_space<vmem>>
    %17 = tpu.memref_squeeze %16 : memref<1x10x24x128xf32, #tpu.memory_space<vmem>> -> memref<10x24x128xf32, #tpu.memory_space<vmem>>
    %18 = tpu.memref_slice %arg9[%9] : memref<2x!tpu.dma_semaphore, #tpu.memory_space<semaphore_mem>> -> memref<1x!tpu.dma_semaphore, #tpu.memory_space<semaphore_mem>>
    %19 = tpu.memref_squeeze %18 : memref<1x!tpu.dma_semaphore, #tpu.memory_space<semaphore_mem>> -> memref<!tpu.dma_semaphore, #tpu.memory_space<semaphore_mem>>
    tpu.wait_dma2 semaphore(%19 : memref<!tpu.dma_semaphore, #tpu.memory_space<semaphore_mem>>) src(%15 : memref<10x24x128xf32, #tpu.memory_space<any>>) dst(%17 : memref<10x24x128xf32, #tpu.memory_space<vmem>>)
    %c1_i32_10 = arith.constant 1 : i32
    %20 = arith.addi %arg1, %c1_i32_10 : i32
    %c2_i32_11 = arith.constant 2 : i32
    %21 = arith.cmpi slt, %20, %c2_i32_11 : i32
    %22 = arith.extui %21 : i1 to i32
    %c0_i32_12 = arith.constant 0 : i32
    %23 = arith.cmpi ne, %22, %c0_i32_12 : i32
    scf.if %23 {
      %c1_i32_61 = arith.constant 1 : i32
      %122 = arith.addi %arg1, %c1_i32_61 : i32
      %c1_i32_62 = arith.constant 1 : i32
      %123 = arith.subi %c1_i32_62, %9 : i32
      %c8_i32_63 = arith.constant 8 : i32
      %124 = arith.muli %122, %c8_i32_63 : i32
      %c0_i32_64 = arith.constant 0 : i32
      %c0_i32_65 = arith.constant 0 : i32
      %125 = tpu.memref_slice %arg2[%arg0, %124, %c0_i32_64, %c0_i32_65] : memref<2x18x24x128xf32, #tpu.memory_space<any>> -> memref<1x10x24x128xf32, #tpu.memory_space<any>>
      %126 = tpu.memref_squeeze %125 : memref<1x10x24x128xf32, #tpu.memory_space<any>> -> memref<10x24x128xf32, #tpu.memory_space<any>>
      %c0_i32_66 = arith.constant 0 : i32
      %c0_i32_67 = arith.constant 0 : i32
      %c0_i32_68 = arith.constant 0 : i32
      %127 = tpu.memref_slice %arg8[%123, %c0_i32_66, %c0_i32_67, %c0_i32_68] : memref<2x10x24x128xf32, #tpu.memory_space<vmem>> -> memref<1x10x24x128xf32, #tpu.memory_space<vmem>>
      %128 = tpu.memref_squeeze %127 : memref<1x10x24x128xf32, #tpu.memory_space<vmem>> -> memref<10x24x128xf32, #tpu.memory_space<vmem>>
      %129 = tpu.memref_slice %arg9[%123] : memref<2x!tpu.dma_semaphore, #tpu.memory_space<semaphore_mem>> -> memref<1x!tpu.dma_semaphore, #tpu.memory_space<semaphore_mem>>
      %130 = tpu.memref_squeeze %129 : memref<1x!tpu.dma_semaphore, #tpu.memory_space<semaphore_mem>> -> memref<!tpu.dma_semaphore, #tpu.memory_space<semaphore_mem>>
      tpu.enqueue_dma source(%126 : memref<10x24x128xf32, #tpu.memory_space<any>>) target(%128 : memref<10x24x128xf32, #tpu.memory_space<vmem>>) target_semaphore(%130 : memref<!tpu.dma_semaphore, #tpu.memory_space<semaphore_mem>>)
    } else {
    }
    %24 = arith.index_cast %9 : i32 to index
    %c0 = arith.constant 0 : index
    %c0_13 = arith.constant 0 : index
    %c0_14 = arith.constant 0 : index
    %25 = vector.load %arg8[%24, %c0, %c0_13, %c0_14] : memref<2x10x24x128xf32, #tpu.memory_space<vmem>>, vector<1x8x16x128xf32>
    %26 = vector.shape_cast %25 : vector<1x8x16x128xf32> to vector<8x16x128xf32>
    %c0_15 = arith.constant 0 : index
    %c0_16 = arith.constant 0 : index
    %27 = vector.load %arg3[%c0_15, %c0_16] : memref<9x128xf32, #tpu.memory_space<vmem>>, vector<1x128xf32>
    %28 = vector.shape_cast %27 : vector<1x128xf32> to vector<128xf32>
    %29 = vector.shape_cast %28 : vector<128xf32> to vector<1x1x128xf32>
    %30 = vector.broadcast %29 : vector<1x1x128xf32> to vector<8x16x128xf32>
    %31 = arith.mulf %26, %30 : vector<8x16x128xf32>
    %32 = arith.index_cast %9 : i32 to index
    %c0_17 = arith.constant 0 : index
    %c1 = arith.constant 1 : index
    %c0_18 = arith.constant 0 : index
    %33 = vector.load %arg8[%32, %c0_17, %c1, %c0_18] : memref<2x10x24x128xf32, #tpu.memory_space<vmem>>, vector<1x8x16x128xf32>
    %34 = vector.shape_cast %33 : vector<1x8x16x128xf32> to vector<8x16x128xf32>
    %c1_19 = arith.constant 1 : index
    %c0_20 = arith.constant 0 : index
    %35 = vector.load %arg3[%c1_19, %c0_20] : memref<9x128xf32, #tpu.memory_space<vmem>>, vector<1x128xf32>
    %36 = vector.shape_cast %35 : vector<1x128xf32> to vector<128xf32>
    %37 = vector.shape_cast %36 : vector<128xf32> to vector<1x1x128xf32>
    %38 = vector.broadcast %37 : vector<1x1x128xf32> to vector<8x16x128xf32>
    %39 = arith.mulf %34, %38 : vector<8x16x128xf32>
    %40 = arith.addf %31, %39 : vector<8x16x128xf32>
    %41 = arith.index_cast %9 : i32 to index
    %c0_21 = arith.constant 0 : index
    %c2 = arith.constant 2 : index
    %c0_22 = arith.constant 0 : index
    %42 = vector.load %arg8[%41, %c0_21, %c2, %c0_22] : memref<2x10x24x128xf32, #tpu.memory_space<vmem>>, vector<1x8x16x128xf32>
    %43 = vector.shape_cast %42 : vector<1x8x16x128xf32> to vector<8x16x128xf32>
    %c2_23 = arith.constant 2 : index
    %c0_24 = arith.constant 0 : index
    %44 = vector.load %arg3[%c2_23, %c0_24] : memref<9x128xf32, #tpu.memory_space<vmem>>, vector<1x128xf32>
    %45 = vector.shape_cast %44 : vector<1x128xf32> to vector<128xf32>
    %46 = vector.shape_cast %45 : vector<128xf32> to vector<1x1x128xf32>
    %47 = vector.broadcast %46 : vector<1x1x128xf32> to vector<8x16x128xf32>
    %48 = arith.mulf %43, %47 : vector<8x16x128xf32>
    %49 = arith.addf %40, %48 : vector<8x16x128xf32>
    %50 = arith.index_cast %9 : i32 to index
    %c1_25 = arith.constant 1 : index
    %c0_26 = arith.constant 0 : index
    %c0_27 = arith.constant 0 : index
    %51 = vector.load %arg8[%50, %c1_25, %c0_26, %c0_27] : memref<2x10x24x128xf32, #tpu.memory_space<vmem>>, vector<1x8x16x128xf32>
    %52 = vector.shape_cast %51 : vector<1x8x16x128xf32> to vector<8x16x128xf32>
    %c3 = arith.constant 3 : index
    %c0_28 = arith.constant 0 : index
    %53 = vector.load %arg3[%c3, %c0_28] : memref<9x128xf32, #tpu.memory_space<vmem>>, vector<1x128xf32>
    %54 = vector.shape_cast %53 : vector<1x128xf32> to vector<128xf32>
    %55 = vector.shape_cast %54 : vector<128xf32> to vector<1x1x128xf32>
    %56 = vector.broadcast %55 : vector<1x1x128xf32> to vector<8x16x128xf32>
    %57 = arith.mulf %52, %56 : vector<8x16x128xf32>
    %58 = arith.addf %49, %57 : vector<8x16x128xf32>
    %59 = arith.index_cast %9 : i32 to index
    %c1_29 = arith.constant 1 : index
    %c1_30 = arith.constant 1 : index
    %c0_31 = arith.constant 0 : index
    %60 = vector.load %arg8[%59, %c1_29, %c1_30, %c0_31] : memref<2x10x24x128xf32, #tpu.memory_space<vmem>>, vector<1x8x16x128xf32>
    %61 = vector.shape_cast %60 : vector<1x8x16x128xf32> to vector<8x16x128xf32>
    %c4 = arith.constant 4 : index
    %c0_32 = arith.constant 0 : index
    %62 = vector.load %arg3[%c4, %c0_32] : memref<9x128xf32, #tpu.memory_space<vmem>>, vector<1x128xf32>
    %63 = vector.shape_cast %62 : vector<1x128xf32> to vector<128xf32>
    %64 = vector.shape_cast %63 : vector<128xf32> to vector<1x1x128xf32>
    %65 = vector.broadcast %64 : vector<1x1x128xf32> to vector<8x16x128xf32>
    %66 = arith.mulf %61, %65 : vector<8x16x128xf32>
    %67 = arith.addf %58, %66 : vector<8x16x128xf32>
    %68 = arith.index_cast %9 : i32 to index
    %c1_33 = arith.constant 1 : index
    %c2_34 = arith.constant 2 : index
    %c0_35 = arith.constant 0 : index
    %69 = vector.load %arg8[%68, %c1_33, %c2_34, %c0_35] : memref<2x10x24x128xf32, #tpu.memory_space<vmem>>, vector<1x8x16x128xf32>
    %70 = vector.shape_cast %69 : vector<1x8x16x128xf32> to vector<8x16x128xf32>
    %c5 = arith.constant 5 : index
    %c0_36 = arith.constant 0 : index
    %71 = vector.load %arg3[%c5, %c0_36] : memref<9x128xf32, #tpu.memory_space<vmem>>, vector<1x128xf32>
    %72 = vector.shape_cast %71 : vector<1x128xf32> to vector<128xf32>
    %73 = vector.shape_cast %72 : vector<128xf32> to vector<1x1x128xf32>
    %74 = vector.broadcast %73 : vector<1x1x128xf32> to vector<8x16x128xf32>
    %75 = arith.mulf %70, %74 : vector<8x16x128xf32>
    %76 = arith.addf %67, %75 : vector<8x16x128xf32>
    %77 = arith.index_cast %9 : i32 to index
    %c2_37 = arith.constant 2 : index
    %c0_38 = arith.constant 0 : index
    %c0_39 = arith.constant 0 : index
    %78 = vector.load %arg8[%77, %c2_37, %c0_38, %c0_39] : memref<2x10x24x128xf32, #tpu.memory_space<vmem>>, vector<1x8x16x128xf32>
    %79 = vector.shape_cast %78 : vector<1x8x16x128xf32> to vector<8x16x128xf32>
    %c6 = arith.constant 6 : index
    %c0_40 = arith.constant 0 : index
    %80 = vector.load %arg3[%c6, %c0_40] : memref<9x128xf32, #tpu.memory_space<vmem>>, vector<1x128xf32>
    %81 = vector.shape_cast %80 : vector<1x128xf32> to vector<128xf32>
    %82 = vector.shape_cast %81 : vector<128xf32> to vector<1x1x128xf32>
    %83 = vector.broadcast %82 : vector<1x1x128xf32> to vector<8x16x128xf32>
    %84 = arith.mulf %79, %83 : vector<8x16x128xf32>
    %85 = arith.addf %76, %84 : vector<8x16x128xf32>
    %86 = arith.index_cast %9 : i32 to index
    %c2_41 = arith.constant 2 : index
    %c1_42 = arith.constant 1 : index
    %c0_43 = arith.constant 0 : index
    %87 = vector.load %arg8[%86, %c2_41, %c1_42, %c0_43] : memref<2x10x24x128xf32, #tpu.memory_space<vmem>>, vector<1x8x16x128xf32>
    %88 = vector.shape_cast %87 : vector<1x8x16x128xf32> to vector<8x16x128xf32>
    %c7 = arith.constant 7 : index
    %c0_44 = arith.constant 0 : index
    %89 = vector.load %arg3[%c7, %c0_44] : memref<9x128xf32, #tpu.memory_space<vmem>>, vector<1x128xf32>
    %90 = vector.shape_cast %89 : vector<1x128xf32> to vector<128xf32>
    %91 = vector.shape_cast %90 : vector<128xf32> to vector<1x1x128xf32>
    %92 = vector.broadcast %91 : vector<1x1x128xf32> to vector<8x16x128xf32>
    %93 = arith.mulf %88, %92 : vector<8x16x128xf32>
    %94 = arith.addf %85, %93 : vector<8x16x128xf32>
    %95 = arith.index_cast %9 : i32 to index
    %c2_45 = arith.constant 2 : index
    %c2_46 = arith.constant 2 : index
    %c0_47 = arith.constant 0 : index
    %96 = vector.load %arg8[%95, %c2_45, %c2_46, %c0_47] : memref<2x10x24x128xf32, #tpu.memory_space<vmem>>, vector<1x8x16x128xf32>
    %97 = vector.shape_cast %96 : vector<1x8x16x128xf32> to vector<8x16x128xf32>
    %c8 = arith.constant 8 : index
    %c0_48 = arith.constant 0 : index
    %98 = vector.load %arg3[%c8, %c0_48] : memref<9x128xf32, #tpu.memory_space<vmem>>, vector<1x128xf32>
    %99 = vector.shape_cast %98 : vector<1x128xf32> to vector<128xf32>
    %100 = vector.shape_cast %99 : vector<128xf32> to vector<1x1x128xf32>
    %101 = vector.broadcast %100 : vector<1x1x128xf32> to vector<8x16x128xf32>
    %102 = arith.mulf %97, %101 : vector<8x16x128xf32>
    %103 = arith.addf %94, %102 : vector<8x16x128xf32>
    %c0_49 = arith.constant 0 : index
    %c0_50 = arith.constant 0 : index
    %104 = vector.load %arg4[%c0_49, %c0_50] : memref<1x128xf32, #tpu.memory_space<vmem>>, vector<1x128xf32>
    %105 = vector.shape_cast %104 : vector<1x128xf32> to vector<1x1x128xf32>
    %106 = vector.broadcast %105 : vector<1x1x128xf32> to vector<8x16x128xf32>
    %107 = arith.addf %103, %106 : vector<8x16x128xf32>
    %cst = arith.constant 0.000000e+00 : f32
    %108 = vector.broadcast %cst : f32 to vector<8x16x128xf32>
    %109 = arith.maximumf %107, %108 : vector<8x16x128xf32>
    %110 = vector.shape_cast %109 : vector<8x16x128xf32> to vector<128x128xf32>
    %c0_51 = arith.constant 0 : index
    %c0_52 = arith.constant 0 : index
    %111 = vector.load %arg5[%c0_51, %c0_52] : memref<128x128xf32, #tpu.memory_space<vmem>>, vector<128x128xf32>
    %cst_53 = arith.constant dense<0.000000e+00> : vector<128x128xf32>
    %112 = tpu.matmul %110, %111, %cst_53 {dimension_numbers = #tpu.dot_dimension_numbers<[1], [0], [0], [1], [0, 0, 1, 1], [], []>} : vector<128x128xf32>, vector<128x128xf32>, vector<128x128xf32> -> vector<128x128xf32>
    %c0_54 = arith.constant 0 : index
    %c0_55 = arith.constant 0 : index
    %113 = vector.load %arg6[%c0_54, %c0_55] : memref<1x128xf32, #tpu.memory_space<vmem>>, vector<1x128xf32>
    %114 = vector.broadcast %113 : vector<1x128xf32> to vector<128x128xf32>
    %115 = arith.addf %112, %114 : vector<128x128xf32>
    %cst_56 = arith.constant 0.000000e+00 : f32
    %116 = vector.broadcast %cst_56 : f32 to vector<128x128xf32>
    %117 = arith.maximumf %115, %116 : vector<128x128xf32>
    %118 = vector.shape_cast %117 : vector<128x128xf32> to vector<8x16x128xf32>
    %c0_57 = arith.constant 0 : index
    %c0_58 = arith.constant 0 : index
    %c0_59 = arith.constant 0 : index
    %c0_60 = arith.constant 0 : index
    %119 = vector.load %arg7[%c0_57, %c0_58, %c0_59, %c0_60] : memref<1x8x16x128xf32, #tpu.memory_space<vmem>>, vector<1x8x16x128xf32>
    %120 = vector.shape_cast %119 : vector<1x8x16x128xf32> to vector<8x16x128xf32>
    %121 = vector.shape_cast %118 : vector<8x16x128xf32> to vector<1x8x16x128xf32>
    tpu.vector_store %arg7[%c0_57, %c0_58, %c0_59, %c0_60], %121 {strides = array<i32>} : memref<1x8x16x128xf32, #tpu.memory_space<vmem>>, vector<1x8x16x128xf32>,
    return
  }
  func.func @transform_1(%arg0: i32, %arg1: i32) -> (i32, i32) {
    %c0_i32 = arith.constant 0 : i32
    %c0_i32_0 = arith.constant 0 : i32
    %c0_i32_1 = arith.constant 0 : i32
    return %c0_i32, %c0_i32_0 : i32, i32
  }
  func.func @transform_2(%arg0: i32, %arg1: i32) -> (i32, i32) {
    %c0_i32 = arith.constant 0 : i32
    %c0_i32_0 = arith.constant 0 : i32
    %c0_i32_1 = arith.constant 0 : i32
    return %c0_i32, %c0_i32_0 : i32, i32
  }
  func.func @transform_3(%arg0: i32, %arg1: i32) -> (i32, i32) {
    %c0_i32 = arith.constant 0 : i32
    %c0_i32_0 = arith.constant 0 : i32
    %c0_i32_1 = arith.constant 0 : i32
    return %c0_i32, %c0_i32_0 : i32, i32
  }
  func.func @transform_4(%arg0: i32, %arg1: i32) -> (i32, i32) {
    %c0_i32 = arith.constant 0 : i32
    %c0_i32_0 = arith.constant 0 : i32
    %c0_i32_1 = arith.constant 0 : i32
    return %c0_i32, %c0_i32_0 : i32, i32
  }
  func.func @transform_5(%arg0: i32, %arg1: i32) -> (i32, i32, i32, i32) {
    %c0_i32 = arith.constant 0 : i32
    %c0_i32_0 = arith.constant 0 : i32
    %c0_i32_1 = arith.constant 0 : i32
    return %arg0, %arg1, %c0_i32, %c0_i32_0 : i32, i32, i32, i32
  }
}

</mosaic_0001>

<llo_original>
// kernel: tpu_custom_call.1
$region0: #{tpu_custom_call.1}
  #allocation0 [shape = 'u32[]', space=smem, size = 0x4, offset = 0x4, fixed_abs, tag = 'smem constant byte address 0x4 - core index']
  #allocation1 [shape = 'u32[144,128]{1,0:T(1,128)}', space=vmem, size = 0x12000, scoped, tag = 'internal scratch']
  #allocation2 [shape = 'f32[2,10,24,128]{3,2,1,0:T(8,128)}', space=vmem, size = 0x3c000, scoped, tag = 'scratch operand']
  #allocation3 [shape = 's32[2]{0}', space=sflag, size = 0x8, scoped, tag = 'scratch operand']
  #allocation10 [shape = 's32[]', space=sflag, size = 0x4, offset = 0, fixed_abs, tag = 'sflag constant byte address 0x0 - dummy sync flag']
  #allocation11 [shape = 's32[]', space=sflag, size = 0x4, offset = 0, fixed_abs, tag = 'sflag constant byte address 0x0 - dummy sync flag']
  #allocation12 [shape = 'u32[]', space=smem, size = 0x4, offset = 0x44, fixed_abs, tag = 'smem constant byte address 0x44 - assertion arg 0']
  #allocation13 [shape = 'u32[]', space=smem, size = 0x4, offset = 0x48, fixed_abs, tag = 'smem constant byte address 0x48 - assertion arg 1']
  #allocation14 [shape = 's32[]', space=sflag, size = 0x4, offset = 0, fixed_abs, tag = 'sflag constant byte address 0x0 - dummy sync flag']
  #allocation15 [shape = 's32[]', space=sflag, size = 0x4, offset = 0, fixed_abs, tag = 'sflag constant byte address 0x0 - dummy sync flag']
  %s0 = inlined_call_operand.hbm [shape: f32[2,18,24,128], index: 0, kind: input, shape index: {}]
  %s1 = inlined_call_operand.hbm [shape: f32[9,128], index: 1, kind: input, shape index: {}]
  %s2 = inlined_call_operand.vmem [shape: f32[1,128], index: 2, kind: input, shape index: {}]
  %s3 = inlined_call_operand.hbm [shape: f32[128,128], index: 3, kind: input, shape index: {}]
  %s4 = inlined_call_operand.vmem [shape: f32[1,128], index: 4, kind: input, shape index: {}]
  %s5 = inlined_call_operand.hbm [shape: f32[2,16,16,128], index: 5, kind: output, shape index: {}]
  %s6 = sld [smem:[#allocation0]]
  $region73: #{tpu_custom_call.1} parent=0
    _
  %s8 = ssub.s32 1, %s6
  %s9 = scalar_select 0, %s8, %s6
  $region1: #{tpu_custom_call.1} parent=0
    #allocation4 [shape = 'u8[8192]{0}', space=vmem, size = 0x2000, scoped, tag = 'input window, operand 1, single buffered']
    #allocation5 [shape = 's32[2]{0}', space=sflag, size = 0x8, scoped, tag = 'scoped memory for tpu_custom_call.1']
    #allocation6 [shape = 's32[2]{0}', space=sflag, size = 0x8, scoped, tag = 'scoped memory for tpu_custom_call.1']
    #allocation7 [shape = 'u8[65536]{0}', space=vmem, size = 0x10000, scoped, tag = 'input window, operand 3, single buffered']
    #allocation8 [shape = 's32[1]{0}', space=sflag, size = 0x4, scoped, tag = 'scoped memory for tpu_custom_call.1']
    #allocation9 [shape = 'u8[131072]{0}', space=vmem, size = 0x20000, scoped, tag = 'output window, operand 0']
    %10 = vsyncpa [#allocation5], 0
    %11 = vsyncpa [#allocation8], 0
    %12 = vsyncpa [#allocation6], 0
    %s13 = scalar_lea.sflag [#allocation6], 1
    %14 = vsyncpa %s13, 0
    loop: start=0, step=1, limit=6
    $region2: #{tpu_custom_call.1} parent=1 // loop_pre_header
      _
    $region3: #{tpu_custom_call.1} parent=1 // loop_header
      %s16 = sphi 0, %s20
      %p17 = scmp.ge.s32.totalorder %s16, 6
      %s23 = sphi 0, %s35
      %s24 = sphi 0, %s31
      %s25 = sphi 0, %s23
      %s26 = sphi 0, %s24
      %s27 = sphi 0, %s25
      %s28 = sphi 0, %s26
      %s36 = sphi 0, %s36
      %s38 = sphi 0, %s36
      %s39 = sphi 0, %s38
      %s53 = sphi 0, %s39
      %s57 = sphi 0, %s57
      %s59 = sphi 0, %s57
      %s60 = sphi 0, %s59
      %s74 = sphi 0, %s60
      %s78 = sphi 0, %s78
      %s80 = sphi 0, %s78
      %s81 = sphi 0, %s80
      %s95 = sphi 0, %s81
      %s99 = sphi 0, %s99
      %s101 = sphi 0, %s99
      %s102 = sphi 0, %s101
      %s116 = sphi 0, %s102
      %s124 = sphi 0, %s126
      %s127 = sphi 0, %s124
      %s128 = sphi 0, %s127
      %s144 = sphi 0, %s128
    $region4: #{tpu_custom_call.1} parent=1 // loop_header_branch
      %19 = sbr.rel (%p17) target = $region8
    $region5: #{tpu_custom_call.1} parent=1 // loop_body
      %s21 = ssub.s32 %s16, 1
      %s22 = ssub.s32 %s16, 2
      %s29 = sadd.s32 1, %s24
      %p30 = scmp.ge.s32.totalorder %s29, 2
      %s31 = scalar_select %p30, 0, %s29
      %s32 = sadd.s32 1, %s23
      %s33 = scalar_select %p30, %s32, %s23
      %p34 = scmp.ge.s32.totalorder %s33, 2
      %s35 = scalar_select %p34, 0, %s33
      %s37 = sadd.s32 %s36, 1
      %p40 = scmp.eq.s32.totalorder %s16, 3
      %p41 = scmp.ne.s32.totalorder %s36, %s38
      %p42 = scmp.eq.s32.totalorder %s16, 0
      %p43 = por %p41, %p42
      %p44 = scmp.ne.s32.totalorder %s36, %s38
      %p45 = scmp.eq.s32.totalorder %s21, 3
      %p46 = por %p44, %p45
      %p47 = scmp.ne.s32.totalorder %s38, %s39
      %p48 = scmp.eq.s32.totalorder %s21, 0
      %p49 = por %p47, %p48
      %p50 = scmp.ne.s32.totalorder %s38, %s39
      %p51 = scmp.eq.s32.totalorder %s22, 3
      %p52 = por %p50, %p51
      %p54 = scmp.ne.s32.totalorder %s39, %s53
      %p55 = scmp.eq.s32.totalorder %s22, 0
      %p56 = por %p54, %p55
      %s58 = sadd.s32 %s57, 1
      %p61 = scmp.eq.s32.totalorder %s16, 3
      %p62 = scmp.ne.s32.totalorder %s57, %s59
      %p63 = scmp.eq.s32.totalorder %s16, 0
      %p64 = por %p62, %p63
      %p65 = scmp.ne.s32.totalorder %s57, %s59
      %p66 = scmp.eq.s32.totalorder %s21, 3
      %p67 = por %p65, %p66
      %p68 = scmp.ne.s32.totalorder %s59, %s60
      %p69 = scmp.eq.s32.totalorder %s21, 0
      %p70 = por %p68, %p69
      %p71 = scmp.ne.s32.totalorder %s59, %s60
      %p72 = scmp.eq.s32.totalorder %s22, 3
      %p73 = por %p71, %p72
      %p75 = scmp.ne.s32.totalorder %s60, %s74
      %p76 = scmp.eq.s32.totalorder %s22, 0
      %p77 = por %p75, %p76
      %s79 = sadd.s32 %s78, 1
      %p82 = scmp.eq.s32.totalorder %s16, 3
      %p83 = scmp.ne.s32.totalorder %s78, %s80
      %p84 = scmp.eq.s32.totalorder %s16, 0
      %p85 = por %p83, %p84
      %p86 = scmp.ne.s32.totalorder %s78, %s80
      %p87 = scmp.eq.s32.totalorder %s21, 3
      %p88 = por %p86, %p87
      %p89 = scmp.ne.s32.totalorder %s80, %s81
      %p90 = scmp.eq.s32.totalorder %s21, 0
      %p91 = por %p89, %p90
      %p92 = scmp.ne.s32.totalorder %s80, %s81
      %p93 = scmp.eq.s32.totalorder %s22, 3
      %p94 = por %p92, %p93
      %p96 = scmp.ne.s32.totalorder %s81, %s95
      %p97 = scmp.eq.s32.totalorder %s22, 0
      %p98 = por %p96, %p97
      %s100 = sadd.s32 %s99, 1
      %p103 = scmp.eq.s32.totalorder %s16, 3
      %p104 = scmp.ne.s32.totalorder %s99, %s101
      %p105 = scmp.eq.s32.totalorder %s16, 0
      %p106 = por %p104, %p105
      %p107 = scmp.ne.s32.totalorder %s99, %s101
      %p108 = scmp.eq.s32.totalorder %s21, 3
      %p109 = por %p107, %p108
      %p110 = scmp.ne.s32.totalorder %s101, %s102
      %p111 = scmp.eq.s32.totalorder %s21, 0
      %p112 = por %p110, %p111
      %p113 = scmp.ne.s32.totalorder %s101, %s102
      %p114 = scmp.eq.s32.totalorder %s22, 3
      %p115 = por %p113, %p114
      %p117 = scmp.ne.s32.totalorder %s102, %s116
      %p118 = scmp.eq.s32.totalorder %s22, 0
      %p119 = por %p117, %p118
      %s120 = ssub.s32 %s23, %s35
      %s121 = ssub.s32 %s24, %s31
      %s122 = sor.u32 %s120, %s121
      %p123 = scmp.eq.s32.totalorder %s122, 0
      %s125 = sadd.s32 %s124, 1
      %s126 = scalar_select %p123, %s124, %s125
      %p129 = pneg %p123
      %p130 = scmp.eq.s32.totalorder %s16, 3
      %p131 = por %p129, %p130
      %p132 = scmp.ne.s32.totalorder %s124, %s127
      %p133 = scmp.eq.s32.totalorder %s16, 0
      %p134 = por %p132, %p133
      %p135 = scmp.ne.s32.totalorder %s124, %s127
      %p136 = scmp.eq.s32.totalorder %s21, 3
      %p137 = por %p135, %p136
      %p138 = scmp.ne.s32.totalorder %s127, %s128
      %p139 = scmp.eq.s32.totalorder %s21, 0
      %p140 = por %p138, %p139
      %p141 = scmp.ne.s32.totalorder %s127, %s128
      %p142 = scmp.eq.s32.totalorder %s22, 3
      %p143 = por %p141, %p142
      %p145 = scmp.ne.s32.totalorder %s128, %s144
      %p146 = scmp.eq.s32.totalorder %s22, 0
      %p147 = por %p145, %p146
      %p148 = scmp.le.s32.totalorder 1, %s16
      %p149 = scmp.lt.s32.totalorder %s16, 5
      %p150 = pnand %p148, %p149
      %p151 = pneg %p150
      // Predicated region
      $region9: #{tpu_custom_call.1} parent=5 // pred_check
        _
      $region10: #{tpu_custom_call.1} parent=5 // pred_check_branch
        %153 = sbr.rel (%p150) target = $region12
      $region11: #{tpu_custom_call.1} parent=5 // pred_region
        %s154 = ssub.s32 %s16, 1
        // Predicated region
        $region13: #{tpu_custom_call.1} parent=11 // pred_check
          %p155 = pneg %p49
        $region14: #{tpu_custom_call.1} parent=11 // pred_check_branch
          %157 = sbr.rel (%p155) target = $region16
        $region15: #{tpu_custom_call.1} parent=11 // pred_region
          %s159 = ssub.s32 256, 256
          %160 = vsyncadd [#allocation5], %s159
          %s161 = sshll.u32 [#allocation4], 4
          %s162 = int_to_ptr.vmem [resolvable:$true] %s161
          %167 = dma.hbm_to_vmem [thread:$0]  %s1, 256, %s162, [#allocation5], 128, 128, 8
        $region16: #{tpu_custom_call.1} parent=11 // pred_fallthru
          _
        // Predicated region
        $region17: #{tpu_custom_call.1} parent=11 // pred_check
          %p168 = pneg %p70
        $region18: #{tpu_custom_call.1} parent=11 // pred_check_branch
          %170 = sbr.rel (%p168) target = $region20
        $region19: #{tpu_custom_call.1} parent=11 // pred_region
          _
        $region20: #{tpu_custom_call.1} parent=11 // pred_fallthru
          _
        // Predicated region
        $region21: #{tpu_custom_call.1} parent=11 // pred_check
          %p171 = pneg %p91
        $region22: #{tpu_custom_call.1} parent=11 // pred_check_branch
          %173 = sbr.rel (%p171) target = $region24
        $region23: #{tpu_custom_call.1} parent=11 // pred_region
          %s175 = ssub.s32 2048, 2048
          %176 = vsyncadd [#allocation8], %s175
          %s177 = sshll.u32 [#allocation7], 4
          %s178 = int_to_ptr.vmem [resolvable:$true] %s177
          %183 = dma.hbm_to_vmem [thread:$0]  %s3, 2048, %s178, [#allocation8], 128, 128, 8
        $region24: #{tpu_custom_call.1} parent=11 // pred_fallthru
          _
        // Predicated region
        $region25: #{tpu_custom_call.1} parent=11 // pred_check
          %p184 = pneg %p112
        $region26: #{tpu_custom_call.1} parent=11 // pred_check_branch
          %186 = sbr.rel (%p184) target = $region28
        $region27: #{tpu_custom_call.1} parent=11 // pred_region
          _
        $region28: #{tpu_custom_call.1} parent=11 // pred_fallthru
          _
      $region12: #{tpu_custom_call.1} parent=5 // pred_fallthru
        _
      %p187 = scmp.lt.s32.totalorder %s16, 4
      // Predicated region
      $region29: #{tpu_custom_call.1} parent=5 // pred_check
        %p188 = pneg %p187
      $region30: #{tpu_custom_call.1} parent=5 // pred_check_branch
        %190 = sbr.rel (%p188) target = $region32
      $region31: #{tpu_custom_call.1} parent=5 // pred_region
        _
      $region32: #{tpu_custom_call.1} parent=5 // pred_fallthru
        _
      %p191 = scmp.le.s32.totalorder 1, %s16
      %p192 = scmp.lt.s32.totalorder %s16, 5
      %p193 = pnand %p191, %p192
      %p194 = pneg %p193
      // Predicated region
      $region33: #{tpu_custom_call.1} parent=5 // pred_check
        _
      $region34: #{tpu_custom_call.1} parent=5 // pred_check_branch
        %196 = sbr.rel (%p193) target = $region36
      $region35: #{tpu_custom_call.1} parent=5 // pred_region
        %s197 = ssub.s32 %s16, 1
        // Predicated region
        $region37: #{tpu_custom_call.1} parent=35 // pred_check
          %p198 = pneg %p49
        $region38: #{tpu_custom_call.1} parent=35 // pred_check_branch
          %200 = sbr.rel (%p198) target = $region40
        $region39: #{tpu_custom_call.1} parent=35 // pred_region
          %201 = dma.done [#allocation5], 256
        $region40: #{tpu_custom_call.1} parent=35 // pred_fallthru
          _
        // Predicated region
        $region41: #{tpu_custom_call.1} parent=35 // pred_check
          %p202 = pneg %p91
        $region42: #{tpu_custom_call.1} parent=35 // pred_check_branch
          %204 = sbr.rel (%p202) target = $region44
        $region43: #{tpu_custom_call.1} parent=35 // pred_region
          %205 = dma.done [#allocation8], 2048
        $region44: #{tpu_custom_call.1} parent=35 // pred_fallthru
          _
        %p206 = pneg %p49
        %p207 = pneg %p46
        %p208 = pneg %p70
        %p209 = pneg %p67
        %p210 = pneg %p91
        %p211 = pneg %p88
        %p212 = pneg %p112
        %p213 = pneg %p109
        %p214 = pneg %p140
        %p215 = pneg %p137
        %s216 = sand.u32 %s127, 1
        %s217 = scalar_lea.sflag [#allocation6], %s216
        %s218 = sand.u32 %s127, 1
        %s219 = smul.addr %s218, 128
        %s220 = scalar_lea.vmem [#allocation9], %s219
        %s221 = smul.u32 8, %s26
        %p222 = scmp.lt.s32.totalorder %s26, 0
        %s223 = ssub.s32 0, %s26
        %s224 = scalar_select %p222, %s223, %s26
        %s225 = sand.u32 %s224, 1
        %s226 = ssub.s32 0, %s225
        %s227 = scalar_select %p222, %s226, %s225
        %p228 = scmp.ne.s32.totalorder %s227, 0
        %p229 = scmp.lt.s32.totalorder %s227, 0
        %p230 = pnand %p229, %p228
        %p231 = pneg %p230
        %s232 = sadd.s32 %s227, 2
        %s233 = scalar_select %p231, %s232, %s227
        %p234 = scmp.eq.s32.totalorder %s26, 0
        // Predicated region
        $region45: #{tpu_custom_call.1} parent=35 // pred_check
          %p235 = pneg %p234
        $region46: #{tpu_custom_call.1} parent=35 // pred_check_branch
          %237 = sbr.rel (%p235) target = $region48
        $region47: #{tpu_custom_call.1} parent=35 // pred_region
          %s238 = smul.u32 %s25, 432
          %s239 = smul.addr %s238, 16
          %s240 = scalar_lea.hbm %s0, %s239
          // Predicated region
          $region49: #{tpu_custom_call.1} parent=47 // pred_check
            _
          $region50: #{tpu_custom_call.1} parent=47 // pred_check_branch
            %242 = sbr.rel target = $region52
          $region51: #{tpu_custom_call.1} parent=47 // pred_region
            %243 = sst [smem:[#allocation12]] [#allocation11]
            %244 = sst [smem:[#allocation13]] [#allocation10]
          $region52: #{tpu_custom_call.1} parent=47 // pred_fallthru
            _
          %246 = shalt.err (0)
          %s248 = sshll.u32 [#allocation2], 4
          %s249 = int_to_ptr.vmem [resolvable:$true] %s248
          %251 = dma.hbm_to_vmem [thread:$0]  %s240, 3840, %s249, [#allocation3]
        $region48: #{tpu_custom_call.1} parent=35 // pred_fallthru
          _
        %s252 = scalar_lea.sflag [#allocation3], %s233
        %s253 = smul.u32 10, 24
        %s254 = smul.u32 %s253, 1
        %s255 = sshll.u32 %s254, 4
        %256 = dma.done %s252, %s255
        %s257 = sadd.s32 %s26, 1
        %p258 = scmp.lt.s32.totalorder %s257, 2
        // Predicated region
        $region53: #{tpu_custom_call.1} parent=35 // pred_check
          %p259 = pneg %p258
        $region54: #{tpu_custom_call.1} parent=35 // pred_check_branch
          %261 = sbr.rel (%p259) target = $region56
        $region55: #{tpu_custom_call.1} parent=35 // pred_region
          %s262 = ssub.s32 1, %s233
          %s263 = smul.u32 %s257, 8
          %s264 = smul.u32 %s263, 24
          %s265 = smul.u32 %s25, 432
          %s266 = sadd.s32 %s264, %s265
          %s267 = smul.addr %s266, 16
          %s268 = scalar_lea.hbm %s0, %s267
          %s269 = smul.u32 %s262, 240
          %s270 = scalar_lea.vmem [#allocation2], %s269
          %s271 = scalar_lea.sflag [#allocation3], %s262
          // Predicated region
          $region57: #{tpu_custom_call.1} parent=55 // pred_check
            _
          $region58: #{tpu_custom_call.1} parent=55 // pred_check_branch
            %273 = sbr.rel target = $region60
          $region59: #{tpu_custom_call.1} parent=55 // pred_region
            %274 = sst [smem:[#allocation12]] [#allocation15]
            %275 = sst [smem:[#allocation13]] [#allocation14]
          $region60: #{tpu_custom_call.1} parent=55 // pred_fallthru
            _
          %277 = shalt.err (0)
          %s279 = sshll.u32 %s270, 4
          %s280 = int_to_ptr.vmem [resolvable:$true] %s279
          %282 = dma.hbm_to_vmem [thread:$0]  %s268, 3840, %s280, %s271
        $region56: #{tpu_custom_call.1} parent=35 // pred_fallthru
          _
        %s283 = smul.u32 %s233, 240
        %s284 = scalar_lea.vmem [#allocation2], %s283
        %v285 = vld [vmem:[%s284] sm:$0xff]
        %v286 = vld [vmem:[%s284 + $0x8] sm:$0xff]
        %v287 = vld [vmem:[%s284 + $0x18] sm:$0xff]
        %v288 = vld [vmem:[%s284 + $0x20] sm:$0xff]
        %v289 = vld [vmem:[%s284 + $0x30] sm:$0xff]
        %v290 = vld [vmem:[%s284 + $0x38] sm:$0xff]
        %v291 = vld [vmem:[%s284 + $0x48] sm:$0xff]
        %v292 = vld [vmem:[%s284 + $0x50] sm:$0xff]
        %v293 = vld [vmem:[%s284 + $0x60] sm:$0xff]
        %v294 = vld [vmem:[%s284 + $0x68] sm:$0xff]
        %v295 = vld [vmem:[%s284 + $0x78] sm:$0xff]
        %v296 = vld [vmem:[%s284 + $0x80] sm:$0xff]
        %v297 = vld [vmem:[%s284 + $0x90] sm:$0xff]
        %v298 = vld [vmem:[%s284 + $0x98] sm:$0xff]
        %v299 = vld [vmem:[%s284 + $0xa8] sm:$0xff]
        %v300 = vld [vmem:[%s284 + $0xb0] sm:$0xff]
        %v301 = vld [vmem:[#allocation4] sm:$0x1]
        %v302 = vlaneseq
        %v303 = vshrl.u32 %v302, 7
        %v304 = vsub.s32 0, %v303
        %v305 = vrot.slane %v301, %v304
        %v306 = vmul.f32 %v285, %v305
        %v307 = vmul.f32 %v286, %v305
        %v308 = vmul.f32 %v287, %v305
        %v309 = vmul.f32 %v288, %v305
        %v310 = vmul.f32 %v289, %v305
        %v311 = vmul.f32 %v290, %v305
        %v312 = vmul.f32 %v291, %v305
        %v313 = vmul.f32 %v292, %v305
        %v314 = vmul.f32 %v293, %v305
        %v315 = vmul.f32 %v294, %v305
        %v316 = vmul.f32 %v295, %v305
        %v317 = vmul.f32 %v296, %v305
        %v318 = vmul.f32 %v297, %v305
        %v319 = vmul.f32 %v298, %v305
        %v320 = vmul.f32 %v299, %v305
        %v321 = vmul.f32 %v300, %v305
        %v322 = vld [vmem:[%s284 + $0x1] sm:$0xff]
        %v323 = vld [vmem:[%s284 + $0x9] sm:$0xff]
        %v324 = vld [vmem:[%s284 + $0x19] sm:$0xff]
        %v325 = vld [vmem:[%s284 + $0x21] sm:$0xff]
        %v326 = vld [vmem:[%s284 + $0x31] sm:$0xff]
        %v327 = vld [vmem:[%s284 + $0x39] sm:$0xff]
        %v328 = vld [vmem:[%s284 + $0x49] sm:$0xff]
        %v329 = vld [vmem:[%s284 + $0x51] sm:$0xff]
        %v330 = vld [vmem:[%s284 + $0x61] sm:$0xff]
        %v331 = vld [vmem:[%s284 + $0x69] sm:$0xff]
        %v332 = vld [vmem:[%s284 + $0x79] sm:$0xff]
        %v333 = vld [vmem:[%s284 + $0x81] sm:$0xff]
        %v334 = vld [vmem:[%s284 + $0x91] sm:$0xff]
        %v335 = vld [vmem:[%s284 + $0x99] sm:$0xff]
        %v336 = vld [vmem:[%s284 + $0xa9] sm:$0xff]
        %v337 = vld [vmem:[%s284 + $0xb1] sm:$0xff]
        %v338 = vld [vmem:[#allocation4 + $0x1] sm:$0x1]
        %v339 = vlaneseq
        %v340 = vshrl.u32 %v339, 7
        %v341 = vsub.s32 0, %v340
        %v342 = vrot.slane %v338, %v341
        %v343 = vmul.f32 %v322, %v342
        %v344 = vmul.f32 %v323, %v342
        %v345 = vmul.f32 %v324, %v342
        %v346 = vmul.f32 %v325, %v342
        %v347 = vmul.f32 %v326, %v342
        %v348 = vmul.f32 %v327, %v342
        %v349 = vmul.f32 %v328, %v342
        %v350 = vmul.f32 %v329, %v342
        %v351 = vmul.f32 %v330, %v342
        %v352 = vmul.f32 %v331, %v342
        %v353 = vmul.f32 %v332, %v342
        %v354 = vmul.f32 %v333, %v342
        %v355 = vmul.f32 %v334, %v342
        %v356 = vmul.f32 %v335, %v342
        %v357 = vmul.f32 %v336, %v342
        %v358 = vmul.f32 %v337, %v342
        %v359 = vadd.f32 %v306, %v343
        %v360 = vadd.f32 %v307, %v344
        %v361 = vadd.f32 %v308, %v345
        %v362 = vadd.f32 %v309, %v346
        %v363 = vadd.f32 %v310, %v347
        %v364 = vadd.f32 %v311, %v348
        %v365 = vadd.f32 %v312, %v349
        %v366 = vadd.f32 %v313, %v350
        %v367 = vadd.f32 %v314, %v351
        %v368 = vadd.f32 %v315, %v352
        %v369 = vadd.f32 %v316, %v353
        %v370 = vadd.f32 %v317, %v354
        %v371 = vadd.f32 %v318, %v355
        %v372 = vadd.f32 %v319, %v356
        %v373 = vadd.f32 %v320, %v357
        %v374 = vadd.f32 %v321, %v358
        %v375 = vld [vmem:[%s284 + $0x2] sm:$0xff]
        %v376 = vld [vmem:[%s284 + $0xa] sm:$0xff]
        %v377 = vld [vmem:[%s284 + $0x1a] sm:$0xff]
        %v378 = vld [vmem:[%s284 + $0x22] sm:$0xff]
        %v379 = vld [vmem:[%s284 + $0x32] sm:$0xff]
        %v380 = vld [vmem:[%s284 + $0x3a] sm:$0xff]
        %v381 = vld [vmem:[%s284 + $0x4a] sm:$0xff]
        %v382 = vld [vmem:[%s284 + $0x52] sm:$0xff]
        %v383 = vld [vmem:[%s284 + $0x62] sm:$0xff]
        %v384 = vld [vmem:[%s284 + $0x6a] sm:$0xff]
        %v385 = vld [vmem:[%s284 + $0x7a] sm:$0xff]
        %v386 = vld [vmem:[%s284 + $0x82] sm:$0xff]
        %v387 = vld [vmem:[%s284 + $0x92] sm:$0xff]
        %v388 = vld [vmem:[%s284 + $0x9a] sm:$0xff]
        %v389 = vld [vmem:[%s284 + $0xaa] sm:$0xff]
        %v390 = vld [vmem:[%s284 + $0xb2] sm:$0xff]
        %v391 = vld [vmem:[#allocation4 + $0x2] sm:$0x1]
        %v392 = vlaneseq
        %v393 = vshrl.u32 %v392, 7
        %v394 = vsub.s32 0, %v393
        %v395 = vrot.slane %v391, %v394
        %v396 = vmul.f32 %v375, %v395
        %v397 = vmul.f32 %v376, %v395
        %v398 = vmul.f32 %v377, %v395
        %v399 = vmul.f32 %v378, %v395
        %v400 = vmul.f32 %v379, %v395
        %v401 = vmul.f32 %v380, %v395
        %v402 = vmul.f32 %v381, %v395
        %v403 = vmul.f32 %v382, %v395
        %v404 = vmul.f32 %v383, %v395
        %v405 = vmul.f32 %v384, %v395
        %v406 = vmul.f32 %v385, %v395
        %v407 = vmul.f32 %v386, %v395
        %v408 = vmul.f32 %v387, %v395
        %v409 = vmul.f32 %v388, %v395
        %v410 = vmul.f32 %v389, %v395
        %v411 = vmul.f32 %v390, %v395
        %v412 = vadd.f32 %v359, %v396
        %v413 = vadd.f32 %v360, %v397
        %v414 = vadd.f32 %v361, %v398
        %v415 = vadd.f32 %v362, %v399
        %v416 = vadd.f32 %v363, %v400
        %v417 = vadd.f32 %v364, %v401
        %v418 = vadd.f32 %v365, %v402
        %v419 = vadd.f32 %v366, %v403
        %v420 = vadd.f32 %v367, %v404
        %v421 = vadd.f32 %v368, %v405
        %v422 = vadd.f32 %v369, %v406
        %v423 = vadd.f32 %v370, %v407
        %v424 = vadd.f32 %v371, %v408
        %v425 = vadd.f32 %v372, %v409
        %v426 = vadd.f32 %v373, %v410
        %v427 = vadd.f32 %v374, %v411
        %s428 = sadd.s32 24, %s283
        %s429 = scalar_lea.vmem [#allocation2], %s428
        %v430 = vld [vmem:[%s429] sm:$0xff]
        %v431 = vld [vmem:[%s429 + $0x8] sm:$0xff]
        %v432 = vld [vmem:[%s429 + $0x18] sm:$0xff]
        %v433 = vld [vmem:[%s429 + $0x20] sm:$0xff]
        %v434 = vld [vmem:[%s429 + $0x30] sm:$0xff]
        %v435 = vld [vmem:[%s429 + $0x38] sm:$0xff]
        %v436 = vld [vmem:[%s429 + $0x48] sm:$0xff]
        %v437 = vld [vmem:[%s429 + $0x50] sm:$0xff]
        %v438 = vld [vmem:[%s429 + $0x60] sm:$0xff]
        %v439 = vld [vmem:[%s429 + $0x68] sm:$0xff]
        %v440 = vld [vmem:[%s429 + $0x78] sm:$0xff]
        %v441 = vld [vmem:[%s429 + $0x80] sm:$0xff]
        %v442 = vld [vmem:[%s429 + $0x90] sm:$0xff]
        %v443 = vld [vmem:[%s429 + $0x98] sm:$0xff]
        %v444 = vld [vmem:[%s429 + $0xa8] sm:$0xff]
        %v445 = vld [vmem:[%s429 + $0xb0] sm:$0xff]
        %v446 = vld [vmem:[#allocation4 + $0x3] sm:$0x1]
        %v447 = vlaneseq
        %v448 = vshrl.u32 %v447, 7
        %v449 = vsub.s32 0, %v448
        %v450 = vrot.slane %v446, %v449
        %v451 = vmul.f32 %v430, %v450
        %v452 = vmul.f32 %v431, %v450
        %v453 = vmul.f32 %v432, %v450
        %v454 = vmul.f32 %v433, %v450
        %v455 = vmul.f32 %v434, %v450
        %v456 = vmul.f32 %v435, %v450
        %v457 = vmul.f32 %v436, %v450
        %v458 = vmul.f32 %v437, %v450
        %v459 = vmul.f32 %v438, %v450
        %v460 = vmul.f32 %v439, %v450
        %v461 = vmul.f32 %v440, %v450
        %v462 = vmul.f32 %v441, %v450
        %v463 = vmul.f32 %v442, %v450
        %v464 = vmul.f32 %v443, %v450
        %v465 = vmul.f32 %v444, %v450
        %v466 = vmul.f32 %v445, %v450
        %v467 = vadd.f32 %v412, %v451
        %v468 = vadd.f32 %v413, %v452
        %v469 = vadd.f32 %v414, %v453
        %v470 = vadd.f32 %v415, %v454
        %v471 = vadd.f32 %v416, %v455
        %v472 = vadd.f32 %v417, %v456
        %v473 = vadd.f32 %v418, %v457
        %v474 = vadd.f32 %v419, %v458
        %v475 = vadd.f32 %v420, %v459
        %v476 = vadd.f32 %v421, %v460
        %v477 = vadd.f32 %v422, %v461
        %v478 = vadd.f32 %v423, %v462
        %v479 = vadd.f32 %v424, %v463
        %v480 = vadd.f32 %v425, %v464
        %v481 = vadd.f32 %v426, %v465
        %v482 = vadd.f32 %v427, %v466
        %v483 = vld [vmem:[%s429 + $0x1] sm:$0xff]
        %v484 = vld [vmem:[%s429 + $0x9] sm:$0xff]
        %v485 = vld [vmem:[%s429 + $0x19] sm:$0xff]
        %v486 = vld [vmem:[%s429 + $0x21] sm:$0xff]
        %v487 = vld [vmem:[%s429 + $0x31] sm:$0xff]
        %v488 = vld [vmem:[%s429 + $0x39] sm:$0xff]
        %v489 = vld [vmem:[%s429 + $0x49] sm:$0xff]
        %v490 = vld [vmem:[%s429 + $0x51] sm:$0xff]
        %v491 = vld [vmem:[%s429 + $0x61] sm:$0xff]
        %v492 = vld [vmem:[%s429 + $0x69] sm:$0xff]
        %v493 = vld [vmem:[%s429 + $0x79] sm:$0xff]
        %v494 = vld [vmem:[%s429 + $0x81] sm:$0xff]
        %v495 = vld [vmem:[%s429 + $0x91] sm:$0xff]
        %v496 = vld [vmem:[%s429 + $0x99] sm:$0xff]
        %v497 = vld [vmem:[%s429 + $0xa9] sm:$0xff]
        %v498 = vld [vmem:[%s429 + $0xb1] sm:$0xff]
        %v499 = vld [vmem:[#allocation4 + $0x4] sm:$0x1]
        %v500 = vlaneseq
        %v501 = vshrl.u32 %v500, 7
        %v502 = vsub.s32 0, %v501
        %v503 = vrot.slane %v499, %v502
        %v504 = vmul.f32 %v483, %v503
        %v505 = vmul.f32 %v484, %v503
        %v506 = vmul.f32 %v485, %v503
        %v507 = vmul.f32 %v486, %v503
        %v508 = vmul.f32 %v487, %v503
        %v509 = vmul.f32 %v488, %v503
        %v510 = vmul.f32 %v489, %v503
        %v511 = vmul.f32 %v490, %v503
        %v512 = vmul.f32 %v491, %v503
        %v513 = vmul.f32 %v492, %v503
        %v514 = vmul.f32 %v493, %v503
        %v515 = vmul.f32 %v494, %v503
        %v516 = vmul.f32 %v495, %v503
        %v517 = vmul.f32 %v496, %v503
        %v518 = vmul.f32 %v497, %v503
        %v519 = vmul.f32 %v498, %v503
        %v520 = vadd.f32 %v467, %v504
        %v521 = vadd.f32 %v468, %v505
        %v522 = vadd.f32 %v469, %v506
        %v523 = vadd.f32 %v470, %v507
        %v524 = vadd.f32 %v471, %v508
        %v525 = vadd.f32 %v472, %v509
        %v526 = vadd.f32 %v473, %v510
        %v527 = vadd.f32 %v474, %v511
        %v528 = vadd.f32 %v475, %v512
        %v529 = vadd.f32 %v476, %v513
        %v530 = vadd.f32 %v477, %v514
        %v531 = vadd.f32 %v478, %v515
        %v532 = vadd.f32 %v479, %v516
        %v533 = vadd.f32 %v480, %v517
        %v534 = vadd.f32 %v481, %v518
        %v535 = vadd.f32 %v482, %v519
        %v536 = vld [vmem:[%s429 + $0x2] sm:$0xff]
        %v537 = vld [vmem:[%s429 + $0xa] sm:$0xff]
        %v538 = vld [vmem:[%s429 + $0x1a] sm:$0xff]
        %v539 = vld [vmem:[%s429 + $0x22] sm:$0xff]
        %v540 = vld [vmem:[%s429 + $0x32] sm:$0xff]
        %v541 = vld [vmem:[%s429 + $0x3a] sm:$0xff]
        %v542 = vld [vmem:[%s429 + $0x4a] sm:$0xff]
        %v543 = vld [vmem:[%s429 + $0x52] sm:$0xff]
        %v544 = vld [vmem:[%s429 + $0x62] sm:$0xff]
        %v545 = vld [vmem:[%s429 + $0x6a] sm:$0xff]
        %v546 = vld [vmem:[%s429 + $0x7a] sm:$0xff]
        %v547 = vld [vmem:[%s429 + $0x82] sm:$0xff]
        %v548 = vld [vmem:[%s429 + $0x92] sm:$0xff]
        %v549 = vld [vmem:[%s429 + $0x9a] sm:$0xff]
        %v550 = vld [vmem:[%s429 + $0xaa] sm:$0xff]
        %v551 = vld [vmem:[%s429 + $0xb2] sm:$0xff]
        %v552 = vld [vmem:[#allocation4 + $0x5] sm:$0x1]
        %v553 = vlaneseq
        %v554 = vshrl.u32 %v553, 7
        %v555 = vsub.s32 0, %v554
        %v556 = vrot.slane %v552, %v555
        %v557 = vmul.f32 %v536, %v556
        %v558 = vmul.f32 %v537, %v556
        %v559 = vmul.f32 %v538, %v556
        %v560 = vmul.f32 %v539, %v556
        %v561 = vmul.f32 %v540, %v556
        %v562 = vmul.f32 %v541, %v556
        %v563 = vmul.f32 %v542, %v556
        %v564 = vmul.f32 %v543, %v556
        %v565 = vmul.f32 %v544, %v556
        %v566 = vmul.f32 %v545, %v556
        %v567 = vmul.f32 %v546, %v556
        %v568 = vmul.f32 %v547, %v556
        %v569 = vmul.f32 %v548, %v556
        %v570 = vmul.f32 %v549, %v556
        %v571 = vmul.f32 %v550, %v556
        %v572 = vmul.f32 %v551, %v556
        %v573 = vadd.f32 %v520, %v557
        %v574 = vadd.f32 %v521, %v558
        %v575 = vadd.f32 %v522, %v559
        %v576 = vadd.f32 %v523, %v560
        %v577 = vadd.f32 %v524, %v561
        %v578 = vadd.f32 %v525, %v562
        %v579 = vadd.f32 %v526, %v563
        %v580 = vadd.f32 %v527, %v564
        %v581 = vadd.f32 %v528, %v565
        %v582 = vadd.f32 %v529, %v566
        %v583 = vadd.f32 %v530, %v567
        %v584 = vadd.f32 %v531, %v568
        %v585 = vadd.f32 %v532, %v569
        %v586 = vadd.f32 %v533, %v570
        %v587 = vadd.f32 %v534, %v571
        %v588 = vadd.f32 %v535, %v572
        %s589 = sadd.s32 48, %s283
        %s590 = scalar_lea.vmem [#allocation2], %s589
        %v591 = vld [vmem:[%s590] sm:$0xff]
        %v592 = vld [vmem:[%s590 + $0x8] sm:$0xff]
        %v593 = vld [vmem:[%s590 + $0x18] sm:$0xff]
        %v594 = vld [vmem:[%s590 + $0x20] sm:$0xff]
        %v595 = vld [vmem:[%s590 + $0x30] sm:$0xff]
        %v596 = vld [vmem:[%s590 + $0x38] sm:$0xff]
        %v597 = vld [vmem:[%s590 + $0x48] sm:$0xff]
        %v598 = vld [vmem:[%s590 + $0x50] sm:$0xff]
        %v599 = vld [vmem:[%s590 + $0x60] sm:$0xff]
        %v600 = vld [vmem:[%s590 + $0x68] sm:$0xff]
        %v601 = vld [vmem:[%s590 + $0x78] sm:$0xff]
        %v602 = vld [vmem:[%s590 + $0x80] sm:$0xff]
        %v603 = vld [vmem:[%s590 + $0x90] sm:$0xff]
        %v604 = vld [vmem:[%s590 + $0x98] sm:$0xff]
        %v605 = vld [vmem:[%s590 + $0xa8] sm:$0xff]
        %v606 = vld [vmem:[%s590 + $0xb0] sm:$0xff]
        %v607 = vld [vmem:[#allocation4 + $0x6] sm:$0x1]
        %v608 = vlaneseq
        %v609 = vshrl.u32 %v608, 7
        %v610 = vsub.s32 0, %v609
        %v611 = vrot.slane %v607, %v610
        %v612 = vmul.f32 %v591, %v611
        %v613 = vmul.f32 %v592, %v611
        %v614 = vmul.f32 %v593, %v611
        %v615 = vmul.f32 %v594, %v611
        %v616 = vmul.f32 %v595, %v611
        %v617 = vmul.f32 %v596, %v611
        %v618 = vmul.f32 %v597, %v611
        %v619 = vmul.f32 %v598, %v611
        %v620 = vmul.f32 %v599, %v611
        %v621 = vmul.f32 %v600, %v611
        %v622 = vmul.f32 %v601, %v611
        %v623 = vmul.f32 %v602, %v611
        %v624 = vmul.f32 %v603, %v611
        %v625 = vmul.f32 %v604, %v611
        %v626 = vmul.f32 %v605, %v611
        %v627 = vmul.f32 %v606, %v611
        %v628 = vadd.f32 %v573, %v612
        %v629 = vadd.f32 %v574, %v613
        %v630 = vadd.f32 %v575, %v614
        %v631 = vadd.f32 %v576, %v615
        %v632 = vadd.f32 %v577, %v616
        %v633 = vadd.f32 %v578, %v617
        %v634 = vadd.f32 %v579, %v618
        %v635 = vadd.f32 %v580, %v619
        %v636 = vadd.f32 %v581, %v620
        %v637 = vadd.f32 %v582, %v621
        %v638 = vadd.f32 %v583, %v622
        %v639 = vadd.f32 %v584, %v623
        %v640 = vadd.f32 %v585, %v624
        %v641 = vadd.f32 %v586, %v625
        %v642 = vadd.f32 %v587, %v626
        %v643 = vadd.f32 %v588, %v627
        %v644 = vld [vmem:[%s590 + $0x1] sm:$0xff]
        %v645 = vld [vmem:[%s590 + $0x9] sm:$0xff]
        %v646 = vld [vmem:[%s590 + $0x19] sm:$0xff]
        %v647 = vld [vmem:[%s590 + $0x21] sm:$0xff]
        %v648 = vld [vmem:[%s590 + $0x31] sm:$0xff]
        %v649 = vld [vmem:[%s590 + $0x39] sm:$0xff]
        %v650 = vld [vmem:[%s590 + $0x49] sm:$0xff]
        %v651 = vld [vmem:[%s590 + $0x51] sm:$0xff]
        %v652 = vld [vmem:[%s590 + $0x61] sm:$0xff]
        %v653 = vld [vmem:[%s590 + $0x69] sm:$0xff]
        %v654 = vld [vmem:[%s590 + $0x79] sm:$0xff]
        %v655 = vld [vmem:[%s590 + $0x81] sm:$0xff]
        %v656 = vld [vmem:[%s590 + $0x91] sm:$0xff]
        %v657 = vld [vmem:[%s590 + $0x99] sm:$0xff]
        %v658 = vld [vmem:[%s590 + $0xa9] sm:$0xff]
        %v659 = vld [vmem:[%s590 + $0xb1] sm:$0xff]
        %v660 = vld [vmem:[#allocation4 + $0x7] sm:$0x1]
        %v661 = vlaneseq
        %v662 = vshrl.u32 %v661, 7
        %v663 = vsub.s32 0, %v662
        %v664 = vrot.slane %v660, %v663
        %v665 = vmul.f32 %v644, %v664
        %v666 = vmul.f32 %v645, %v664
        %v667 = vmul.f32 %v646, %v664
        %v668 = vmul.f32 %v647, %v664
        %v669 = vmul.f32 %v648, %v664
        %v670 = vmul.f32 %v649, %v664
        %v671 = vmul.f32 %v650, %v664
        %v672 = vmul.f32 %v651, %v664
        %v673 = vmul.f32 %v652, %v664
        %v674 = vmul.f32 %v653, %v664
        %v675 = vmul.f32 %v654, %v664
        %v676 = vmul.f32 %v655, %v664
        %v677 = vmul.f32 %v656, %v664
        %v678 = vmul.f32 %v657, %v664
        %v679 = vmul.f32 %v658, %v664
        %v680 = vmul.f32 %v659, %v664
        %v681 = vadd.f32 %v628, %v665
        %v682 = vadd.f32 %v629, %v666
        %v683 = vadd.f32 %v630, %v667
        %v684 = vadd.f32 %v631, %v668
        %v685 = vadd.f32 %v632, %v669
        %v686 = vadd.f32 %v633, %v670
        %v687 = vadd.f32 %v634, %v671
        %v688 = vadd.f32 %v635, %v672
        %v689 = vadd.f32 %v636, %v673
        %v690 = vadd.f32 %v637, %v674
        %v691 = vadd.f32 %v638, %v675
        %v692 = vadd.f32 %v639, %v676
        %v693 = vadd.f32 %v640, %v677
        %v694 = vadd.f32 %v641, %v678
        %v695 = vadd.f32 %v642, %v679
        %v696 = vadd.f32 %v643, %v680
        %v697 = vld [vmem:[%s590 + $0x2] sm:$0xff]
        %v698 = vld [vmem:[%s590 + $0xa] sm:$0xff]
        %v699 = vld [vmem:[%s590 + $0x1a] sm:$0xff]
        %v700 = vld [vmem:[%s590 + $0x22] sm:$0xff]
        %v701 = vld [vmem:[%s590 + $0x32] sm:$0xff]
        %v702 = vld [vmem:[%s590 + $0x3a] sm:$0xff]
        %v703 = vld [vmem:[%s590 + $0x4a] sm:$0xff]
        %v704 = vld [vmem:[%s590 + $0x52] sm:$0xff]
        %v705 = vld [vmem:[%s590 + $0x62] sm:$0xff]
        %v706 = vld [vmem:[%s590 + $0x6a] sm:$0xff]
        %v707 = vld [vmem:[%s590 + $0x7a] sm:$0xff]
        %v708 = vld [vmem:[%s590 + $0x82] sm:$0xff]
        %v709 = vld [vmem:[%s590 + $0x92] sm:$0xff]
        %v710 = vld [vmem:[%s590 + $0x9a] sm:$0xff]
        %v711 = vld [vmem:[%s590 + $0xaa] sm:$0xff]
        %v712 = vld [vmem:[%s590 + $0xb2] sm:$0xff]
        %v713 = vld [vmem:[#allocation4 + $0x8] sm:$0x1]
        %v714 = vlaneseq
        %v715 = vshrl.u32 %v714, 7
        %v716 = vsub.s32 0, %v715
        %v717 = vrot.slane %v713, %v716
        %v718 = vmul.f32 %v697, %v717
        %v719 = vmul.f32 %v698, %v717
        %v720 = vmul.f32 %v699, %v717
        %v721 = vmul.f32 %v700, %v717
        %v722 = vmul.f32 %v701, %v717
        %v723 = vmul.f32 %v702, %v717
        %v724 = vmul.f32 %v703, %v717
        %v725 = vmul.f32 %v704, %v717
        %v726 = vmul.f32 %v705, %v717
        %v727 = vmul.f32 %v706, %v717
        %v728 = vmul.f32 %v707, %v717
        %v729 = vmul.f32 %v708, %v717
        %v730 = vmul.f32 %v709, %v717
        %v731 = vmul.f32 %v710, %v717
        %v732 = vmul.f32 %v711, %v717
        %v733 = vmul.f32 %v712, %v717
        %v734 = vadd.f32 %v681, %v718
        %v735 = vadd.f32 %v682, %v719
        %v736 = vadd.f32 %v683, %v720
        %v737 = vadd.f32 %v684, %v721
        %v738 = vadd.f32 %v685, %v722
        %v739 = vadd.f32 %v686, %v723
        %v740 = vadd.f32 %v687, %v724
        %v741 = vadd.f32 %v688, %v725
        %v742 = vadd.f32 %v689, %v726
        %v743 = vadd.f32 %v690, %v727
        %v744 = vadd.f32 %v691, %v728
        %v745 = vadd.f32 %v692, %v729
        %v746 = vadd.f32 %v693, %v730
        %v747 = vadd.f32 %v694, %v731
        %v748 = vadd.f32 %v695, %v732
        %v749 = vadd.f32 %v696, %v733
        %v750 = vld [vmem:[%s2] sm:$0x1]
        %v752 = vlaneseq
        %v753 = vshrl.u32 %v752, 7
        %v754 = vsub.s32 0, %v753
        %v755 = vrot.slane %v750, %v754
        %v757 = vadd.f32 %v734, %v755
        %v758 = vadd.f32 %v735, %v755
        %v759 = vadd.f32 %v736, %v755
        %v760 = vadd.f32 %v737, %v755
        %v761 = vadd.f32 %v738, %v755
        %v762 = vadd.f32 %v739, %v755
        %v763 = vadd.f32 %v740, %v755
        %v764 = vadd.f32 %v741, %v755
        %v765 = vadd.f32 %v742, %v755
        %v766 = vadd.f32 %v743, %v755
        %v767 = vadd.f32 %v744, %v755
        %v768 = vadd.f32 %v745, %v755
        %v769 = vadd.f32 %v746, %v755
        %v770 = vadd.f32 %v747, %v755
        %v771 = vadd.f32 %v748, %v755
        %v772 = vadd.f32 %v749, %v755
        %v773 = vmax.f32 %v757, 0.0
        %v774 = vmax.f32 %v758, 0.0
        %v775 = vmax.f32 %v759, 0.0
        %v776 = vmax.f32 %v760, 0.0
        %v777 = vmax.f32 %v761, 0.0
        %v778 = vmax.f32 %v762, 0.0
        %v779 = vmax.f32 %v763, 0.0
        %v780 = vmax.f32 %v764, 0.0
        %v781 = vmax.f32 %v765, 0.0
        %v782 = vmax.f32 %v766, 0.0
        %v783 = vmax.f32 %v767, 0.0
        %v784 = vmax.f32 %v768, 0.0
        %v785 = vmax.f32 %v769, 0.0
        %v786 = vmax.f32 %v770, 0.0
        %v787 = vmax.f32 %v771, 0.0
        %v788 = vmax.f32 %v772, 0.0
        %v789 = vld [vmem:[#allocation7] sm:$0xff]
        %v790 = vld [vmem:[#allocation7 + $0x8] sm:$0xff]
        %v791 = vld [vmem:[#allocation7 + $0x10] sm:$0xff]
        %v792 = vld [vmem:[#allocation7 + $0x18] sm:$0xff]
        %v793 = vld [vmem:[#allocation7 + $0x20] sm:$0xff]
        %v794 = vld [vmem:[#allocation7 + $0x28] sm:$0xff]
        %v795 = vld [vmem:[#allocation7 + $0x30] sm:$0xff]
        %v796 = vld [vmem:[#allocation7 + $0x38] sm:$0xff]
        %v797 = vld [vmem:[#allocation7 + $0x40] sm:$0xff]
        %v798 = vld [vmem:[#allocation7 + $0x48] sm:$0xff]
        %v799 = vld [vmem:[#allocation7 + $0x50] sm:$0xff]
        %v800 = vld [vmem:[#allocation7 + $0x58] sm:$0xff]
        %v801 = vld [vmem:[#allocation7 + $0x60] sm:$0xff]
        %v802 = vld [vmem:[#allocation7 + $0x68] sm:$0xff]
        %v803 = vld [vmem:[#allocation7 + $0x70] sm:$0xff]
        %v804 = vld [vmem:[#allocation7 + $0x78] sm:$0xff]
        %v805 = vld [vmem:[%s4] sm:$0x1]
        %v807 = vlaneseq
        %v808 = vshrl.u32 %v807, 7
        %v809 = vsub.s32 0, %v808
        %v810 = vrot.slane %v805, %v809
        %812 = vmatprep.subr.mxu0 0.0
        %813 = vmatpush1.msra.mxu0 %v789
        %814 = vmatprep.subr.mxu0 0.0
        %815 = vmatpush1.msra.mxu0 %v790
        %816 = vmatprep.subr.mxu0 0.0
        %817 = vmatpush1.msra.mxu0 %v791
        %818 = vmatprep.subr.mxu0 0.0
        %819 = vmatpush1.msra.mxu0 %v792
        %820 = vmatprep.subr.mxu0 0.0
        %821 = vmatpush1.msra.mxu0 %v793
        %822 = vmatprep.subr.mxu0 0.0
        %823 = vmatpush1.msra.mxu0 %v794
        %824 = vmatprep.subr.mxu0 0.0
        %825 = vmatpush1.msra.mxu0 %v795
        %826 = vmatprep.subr.mxu0 0.0
        %827 = vmatpush1.msra.mxu0 %v796
        %828 = vmatprep.subr.mxu0 0.0
        %829 = vmatpush1.msra.mxu0 %v797
        %830 = vmatprep.subr.mxu0 0.0
        %831 = vmatpush1.msra.mxu0 %v798
        %832 = vmatprep.subr.mxu0 0.0
        %833 = vmatpush1.msra.mxu0 %v799
        %834 = vmatprep.subr.mxu0 0.0
        %835 = vmatpush1.msra.mxu0 %v800
        %836 = vmatprep.subr.mxu0 0.0
        %837 = vmatpush1.msra.mxu0 %v801
        %838 = vmatprep.subr.mxu0 0.0
        %839 = vmatpush1.msra.mxu0 %v802
        %840 = vmatprep.subr.mxu0 0.0
        %841 = vmatpush1.msra.mxu0 %v803
        %842 = vmatprep.subr.mxu0 0.0
        %843 = vmatpush1.msra.mxu0 %v804
        %844 = vmatprep.subr.mxu0 0.0
        %845 = vmatpush1.msra.mxu0 0.0
        %846 = vmatprep.subr.mxu0 0.0
        %847 = vmatpush1.msra.mxu0 0.0
        %848 = vmatprep.subr.mxu0 0.0
        %849 = vmatpush1.msra.mxu0 0.0
        %850 = vmatprep.subr.mxu0 0.0
        %851 = vmatpush1.msra.mxu0 0.0
        %852 = vmatprep.subr.mxu0 0.0
        %853 = vmatpush1.msra.mxu0 0.0
        %854 = vmatprep.subr.mxu0 0.0
        %855 = vmatpush1.msra.mxu0 0.0
        %856 = vmatprep.subr.mxu0 0.0
        %857 = vmatpush1.msra.mxu0 0.0
        %858 = vmatprep.subr.mxu0 0.0
        %859 = vmatpush1.msra.mxu0 0.0
        %860 = vmatprep.subr.mxu0 0.0
        %861 = vmatpush1.msra.mxu0 0.0
        %862 = vmatprep.subr.mxu0 0.0
        %863 = vmatpush1.msra.mxu0 0.0
        %864 = vmatprep.subr.mxu0 0.0
        %865 = vmatpush1.msra.mxu0 0.0
        %866 = vmatprep.subr.mxu0 0.0
        %867 = vmatpush1.msra.mxu0 0.0
        %868 = vmatprep.subr.mxu0 0.0
        %869 = vmatpush1.msra.mxu0 0.0
        %870 = vmatprep.subr.mxu0 0.0
        %871 = vmatpush1.msra.mxu0 0.0
        %872 = vmatprep.subr.mxu0 0.0
        %873 = vmatpush1.msra.mxu0 0.0
        %874 = vmatprep.subr.mxu0 0.0
        %875 = vmatpush1.msra.mxu0 0.0
        %876 = vmatprep.mubr.f32.mxu0 0.0
        %877 = vmatmul.mubr.f32.gmra.mrb[0].mxu0 %v773
        %v878 = vpop.f32.mrb[0].mxu0
        %v879 = vadd.f32 %v810, %v878
        %v880 = vpop.f32.mrb[0].mxu0
        %881 = vmatprep.mubr.f32.mxu0 0.0
        %882 = vmatmul.mubr.f32.gmra.mrb[0].mxu0 %v774
        %v883 = vpop.f32.mrb[0].mxu0
        %v884 = vadd.f32 %v810, %v883
        %v885 = vpop.f32.mrb[0].mxu0
        %886 = vmatprep.mubr.f32.mxu0 0.0
        %887 = vmatmul.mubr.f32.gmra.mrb[0].mxu0 %v775
        %v888 = vpop.f32.mrb[0].mxu0
        %v889 = vadd.f32 %v810, %v888
        %v890 = vpop.f32.mrb[0].mxu0
        %891 = vmatprep.mubr.f32.mxu0 0.0
        %892 = vmatmul.mubr.f32.gmra.mrb[0].mxu0 %v776
        %v893 = vpop.f32.mrb[0].mxu0
        %v894 = vadd.f32 %v810, %v893
        %v895 = vpop.f32.mrb[0].mxu0
        %896 = vmatprep.mubr.f32.mxu0 0.0
        %897 = vmatmul.mubr.f32.gmra.mrb[0].mxu0 %v777
        %v898 = vpop.f32.mrb[0].mxu0
        %v899 = vadd.f32 %v810, %v898
        %v900 = vpop.f32.mrb[0].mxu0
        %901 = vmatprep.mubr.f32.mxu0 0.0
        %902 = vmatmul.mubr.f32.gmra.mrb[0].mxu0 %v778
        %v903 = vpop.f32.mrb[0].mxu0
        %v904 = vadd.f32 %v810, %v903
        %v905 = vpop.f32.mrb[0].mxu0
        %906 = vmatprep.mubr.f32.mxu0 0.0
        %907 = vmatmul.mubr.f32.gmra.mrb[0].mxu0 %v779
        %v908 = vpop.f32.mrb[0].mxu0
        %v909 = vadd.f32 %v810, %v908
        %v910 = vpop.f32.mrb[0].mxu0
        %911 = vmatprep.mubr.f32.mxu0 0.0
        %912 = vmatmul.mubr.f32.gmra.mrb[0].mxu0 %v780
        %v913 = vpop.f32.mrb[0].mxu0
        %v914 = vadd.f32 %v810, %v913
        %v915 = vpop.f32.mrb[0].mxu0
        %916 = vmatprep.mubr.f32.mxu0 0.0
        %917 = vmatmul.mubr.f32.gmra.mrb[0].mxu0 %v781
        %v918 = vpop.f32.mrb[0].mxu0
        %v919 = vadd.f32 %v810, %v918
        %v920 = vpop.f32.mrb[0].mxu0
        %921 = vmatprep.mubr.f32.mxu0 0.0
        %922 = vmatmul.mubr.f32.gmra.mrb[0].mxu0 %v782
        %v923 = vpop.f32.mrb[0].mxu0
        %v924 = vadd.f32 %v810, %v923
        %v925 = vpop.f32.mrb[0].mxu0
        %926 = vmatprep.mubr.f32.mxu0 0.0
        %927 = vmatmul.mubr.f32.gmra.mrb[0].mxu0 %v783
        %v928 = vpop.f32.mrb[0].mxu0
        %v929 = vadd.f32 %v810, %v928
        %v930 = vpop.f32.mrb[0].mxu0
        %931 = vmatprep.mubr.f32.mxu0 0.0
        %932 = vmatmul.mubr.f32.gmra.mrb[0].mxu0 %v784
        %v933 = vpop.f32.mrb[0].mxu0
        %v934 = vadd.f32 %v810, %v933
        %v935 = vpop.f32.mrb[0].mxu0
        %936 = vmatprep.mubr.f32.mxu0 0.0
        %937 = vmatmul.mubr.f32.gmra.mrb[0].mxu0 %v785
        %v938 = vpop.f32.mrb[0].mxu0
        %v939 = vadd.f32 %v810, %v938
        %v940 = vpop.f32.mrb[0].mxu0
        %941 = vmatprep.mubr.f32.mxu0 0.0
        %942 = vmatmul.mubr.f32.gmra.mrb[0].mxu0 %v786
        %v943 = vpop.f32.mrb[0].mxu0
        %v944 = vadd.f32 %v810, %v943
        %v945 = vpop.f32.mrb[0].mxu0
        %946 = vmatprep.mubr.f32.mxu0 0.0
        %947 = vmatmul.mubr.f32.gmra.mrb[0].mxu0 %v787
        %v948 = vpop.f32.mrb[0].mxu0
        %v949 = vadd.f32 %v810, %v948
        %v950 = vpop.f32.mrb[0].mxu0
        %951 = vmatprep.mubr.f32.mxu0 0.0
        %952 = vmatmul.mubr.f32.gmra.mrb[0].mxu0 %v788
        %v953 = vpop.f32.mrb[0].mxu0
        %v954 = vadd.f32 %v810, %v953
        %v955 = vpop.f32.mrb[0].mxu0
        %956 = vdwg.mxu0
        %v957 = vmax.f32 %v879, 0.0
        %v958 = vmax.f32 %v884, 0.0
        %v959 = vmax.f32 %v889, 0.0
        %v960 = vmax.f32 %v894, 0.0
        %v961 = vmax.f32 %v899, 0.0
        %v962 = vmax.f32 %v904, 0.0
        %v963 = vmax.f32 %v909, 0.0
        %v964 = vmax.f32 %v914, 0.0
        %v965 = vmax.f32 %v919, 0.0
        %v966 = vmax.f32 %v924, 0.0
        %v967 = vmax.f32 %v929, 0.0
        %v968 = vmax.f32 %v934, 0.0
        %v969 = vmax.f32 %v939, 0.0
        %v970 = vmax.f32 %v944, 0.0
        %v971 = vmax.f32 %v949, 0.0
        %v972 = vmax.f32 %v954, 0.0
        %973 = vst [vmem:[%s220] sm:$0xff] %v957
        %974 = vst [vmem:[%s220 + $0x8] sm:$0xff] %v958
        %975 = vst [vmem:[%s220 + $0x10] sm:$0xff] %v959
        %976 = vst [vmem:[%s220 + $0x18] sm:$0xff] %v960
        %977 = vst [vmem:[%s220 + $0x20] sm:$0xff] %v961
        %978 = vst [vmem:[%s220 + $0x28] sm:$0xff] %v962
        %979 = vst [vmem:[%s220 + $0x30] sm:$0xff] %v963
        %980 = vst [vmem:[%s220 + $0x38] sm:$0xff] %v964
        %981 = vst [vmem:[%s220 + $0x40] sm:$0xff] %v965
        %982 = vst [vmem:[%s220 + $0x48] sm:$0xff] %v966
        %983 = vst [vmem:[%s220 + $0x50] sm:$0xff] %v967
        %984 = vst [vmem:[%s220 + $0x58] sm:$0xff] %v968
        %985 = vst [vmem:[%s220 + $0x60] sm:$0xff] %v969
        %986 = vst [vmem:[%s220 + $0x68] sm:$0xff] %v970
        %987 = vst [vmem:[%s220 + $0x70] sm:$0xff] %v971
        %988 = vst [vmem:[%s220 + $0x78] sm:$0xff] %v972
        %s989 = sand.u32 %s127, 1
        %s990 = scalar_lea.sflag [#allocation6], %s989
        %s991 = sand.u32 %s127, 1
        %s992 = smul.addr %s991, 128
        %s993 = scalar_lea.vmem [#allocation9], %s992
        // Predicated region
        $region61: #{tpu_custom_call.1} parent=35 // pred_check
          %p994 = pneg %p137
        $region62: #{tpu_custom_call.1} parent=35 // pred_check_branch
          %996 = sbr.rel (%p994) target = $region64
        $region63: #{tpu_custom_call.1} parent=35 // pred_region
          %s997 = smul.u32 8, %s26
          %s999 = ssub.s32 2048, 2048
          %1000 = vsyncadd %s990, %s999
          %s1001 = smul.addr %s997, 2
          %s1002 = smul.addr %s25, 32
          %s1003 = sadd.s32 %s1001, %s1002
          %s1004 = smul.addr %s1003, 128
          %s1005 = scalar_lea.hbm %s5, %s1004
          %s1006 = sshll.u32 %s993, 4
          %s1007 = int_to_ptr.vmem [resolvable:$true] %s1006
          %1012 = dma.vmem_to_hbm [thread:$0]  %s1007, 2048, %s1005, %s990, 128, 128, 8
        $region64: #{tpu_custom_call.1} parent=35 // pred_fallthru
          _
      $region36: #{tpu_custom_call.1} parent=5 // pred_fallthru
        _
      %p1013 = scmp.le.s32.totalorder 2, %s16
      // Predicated region
      $region65: #{tpu_custom_call.1} parent=5 // pred_check
        %p1014 = pneg %p1013
      $region66: #{tpu_custom_call.1} parent=5 // pred_check_branch
        %1016 = sbr.rel (%p1014) target = $region68
      $region67: #{tpu_custom_call.1} parent=5 // pred_region
        %s1017 = ssub.s32 %s16, 2
        // Predicated region
        $region69: #{tpu_custom_call.1} parent=67 // pred_check
          %p1018 = pneg %p143
        $region70: #{tpu_custom_call.1} parent=67 // pred_check_branch
          %1020 = sbr.rel (%p1018) target = $region72
        $region71: #{tpu_custom_call.1} parent=67 // pred_region
          %s1021 = sand.u32 %s128, 1
          %s1022 = scalar_lea.sflag [#allocation6], %s1021
          %s1023 = sand.u32 %s128, 1
          %s1024 = smul.addr %s1023, 128
          %s1025 = scalar_lea.vmem [#allocation9], %s1024
          %1026 = dma.done %s1022, 2048
        $region72: #{tpu_custom_call.1} parent=67 // pred_fallthru
          _
      $region68: #{tpu_custom_call.1} parent=5 // pred_fallthru
        _
    $region6: #{tpu_custom_call.1} parent=1 // loop_footer
      %s20 = sadd.s32 1, %s16
    $region7: #{tpu_custom_call.1} parent=1 // loop_footer_branch
      %15 = sbr.rel target = $region3
    $region8: #{tpu_custom_call.1} parent=1 // loop_exit
      _
    %1027 = vsyncpa [#allocation5], 1
    %s1028 = scalar_lea.sflag [#allocation5], 1
    %1029 = vsyncpa %s1028, 1
    %1030 = vsyncpa [#allocation8], 1
    %1031 = vsyncpa [#allocation6], 1
    %s1032 = scalar_lea.sflag [#allocation6], 1
    %1033 = vsyncpa %s1032, 1
  %1034 = vsyncmov [#allocation3]
  %s1035 = vpop.sfrf %1034
  %p1036 = scmp.eq.s32.totalorder %s1035, 0
  %p1037 = pneg %p1036
  %1039 = shalt.err (%p1037)
  %s1040 = scalar_lea.sflag [#allocation3], 1
  %1041 = vsyncmov %s1040
  %s1042 = vpop.sfrf %1041
  %p1043 = scmp.eq.s32.totalorder %s1042, 0
  %p1044 = pneg %p1043
  %1046 = shalt.err (%p1044)

</llo_original>
